<compile_context>
chip_gen: v5e
topology: v5e:2x2
jax: 0.10.0
libtpu: 0.0.40
codegen_flags: <defaults>
</compile_context>

<pallas_src>
import functools

import jax
import jax.numpy as jnp
from jax.experimental import pallas as pl
from jax.experimental.pallas import tpu as pltpu


def _round_up(x, m):
    return (x + m - 1) // m * m


# ---------------------------------------------------------------------------
# Fused kernel: one (batch n, row-tile h) step computes TH output rows.
# ---------------------------------------------------------------------------
def _fused_bottleneck_kernel(
    xp_ref, w1_ref, s1_ref, b1_ref, w2_ref, s2_ref, b2_ref,
    w3_ref, s3_ref, b3_ref, o_ref, e_ref,
    *, stride, th, h_img, w_img, wo, wo_pad, add_residual):
  h = pl.program_id(1)
  rows_in = (th - 1) * stride + 3            # padded rows needed by this tile
  wpad = xp_ref.shape[2]
  cexp = w1_ref.shape[1]
  cout = w3_ref.shape[1]

  row0 = pl.multiple_of(h * (th * stride), th * stride)

  # ---- stage 1: 1x1 expand + BN + ReLU6, written to VMEM scratch only ----
  xs = xp_ref[0, pl.ds(row0, rows_in), :, :]            # (rows_in, wpad, Cin)
  x2d = xs.reshape(rows_in * wpad, xs.shape[-1])        # aligned merge (wpad % 8 == 0)
  e = jnp.dot(x2d, w1_ref[...], preferred_element_type=jnp.float32)
  e = jnp.clip(e * s1_ref[...] + b1_ref[...], 0.0, 6.0)
  e = e.reshape(rows_in, wpad, cexp)
  # The depthwise conv pads AFTER conv1+bn1+relu6, so the halo ring must be 0
  # (not relu6(shift)); rebuild the zero ring in-register instead of via jnp.pad.
  rows = jax.lax.broadcasted_iota(jnp.int32, (rows_in, wpad, 1), 0) + row0
  cols = jax.lax.broadcasted_iota(jnp.int32, (rows_in, wpad, 1), 1)
  interior = (rows >= 1) & (rows <= h_img) & (cols >= 1) & (cols <= w_img)
  e_ref[...] = jnp.where(interior, e, 0.0).astype(e_ref.dtype)

  # ---- stage 2: 3x3 depthwise + BN + ReLU6 on the VMEM-resident slab ----
  acc = jnp.zeros((th, wo_pad, cexp), jnp.float32)
  for dy in range(3):
    for dx in range(3):
      if stride == 1:
        patch = e_ref[dy:dy + th, dx:dx + wo_pad, :]
      else:
        # TODO(synk): stride-2 taps use strided ref loads; a contiguous-then-
        #             select formulation would cut sublane-strided vld pressure.
        patch = e_ref[pl.ds(dy, th, stride), pl.ds(dx, wo_pad, stride), :]
      acc = acc + patch.astype(jnp.float32) * w2_ref[dy, dx, :].astype(jnp.float32)
  dw = jnp.clip(acc * s2_ref[...] + b2_ref[...], 0.0, 6.0)

  # ---- stage 3: 1x1 project + BN (+ residual) ----
  dw2d = dw.reshape(th * wo_pad, cexp).astype(w3_ref.dtype)   # aligned merge
  out = jnp.dot(dw2d, w3_ref[...], preferred_element_type=jnp.float32)
  out = out * s3_ref[...] + b3_ref[...]
  out = out.reshape(th, wo_pad, cout)
  if add_residual:
    res = xp_ref[0, pl.ds(row0 + 1, th), pl.ds(1, wo_pad), :]
    out = out + res.astype(jnp.float32)
  o_ref[0] = out[:, :wo, :].astype(o_ref.dtype)


def _pick_row_tile(ho, wpad, cexp, stride, itemsize, max_rows, vmem_budget=12 << 20):
  """Largest divisor of Ho that keeps the per-step VMEM working set bounded."""
  per_row = stride * wpad * cexp * itemsize + 2 * wpad * cexp * 4  # scratch + f32 temps
  cap = max(1, min(max_rows, vmem_budget // max(per_row, 1)))
  th = 1
  for d in range(1, ho + 1):
    if ho % d == 0 and d <= cap:
      th = d
  return th


# ---------------------------------------------------------------------------
# Parameter setup + full forward
# ---------------------------------------------------------------------------
def _fold_bn(gamma, beta, mean, var, eps=1e-5):
  scale = gamma / jnp.sqrt(var + eps)
  shift = beta - mean * scale
  return scale.astype(jnp.float32), shift.astype(jnp.float32)


def init_params(key, inplanes, outplanes, t):
  cexp = inplanes * t
  keys = jax.random.split(key, 12)

  def u(k, shape, lo=-0.2, hi=0.2):
    return jax.random.uniform(k, shape, jnp.float32, lo, hi)

  return {
      # conv1: 1x1, stored as (Cin, Cexp) for NHWC matmul
      "w1": u(keys[0], (inplanes, cexp)),
      "bn1": (u(keys[1], (cexp,), 0.5, 1.5), u(keys[2], (cexp,)),
              u(keys[3], (cexp,)), u(keys[4], (cexp,), 0.5, 1.5)),
      # conv2: depthwise 3x3, (3, 3, Cexp)
      "w2": u(keys[5], (3, 3, cexp)),
      "bn2": (u(keys[6], (cexp,), 0.5, 1.5), u(keys[7], (cexp,)),
              u(keys[8], (cexp,)), u(keys[9], (cexp,), 0.5, 1.5)),
      # conv3: 1x1, (Cexp, Cout)
      "w3": u(keys[10], (cexp, outplanes)),
      "bn3": (jnp.ones((outplanes,), jnp.float32), jnp.zeros((outplanes,), jnp.float32),
              jnp.zeros((outplanes,), jnp.float32), jnp.ones((outplanes,), jnp.float32)),
  }


def linear_bottleneck_forward(x_nchw, params, *, inplanes, outplanes, stride, t,
                              compute_dtype=jnp.float32, max_rows_per_tile=8):
  N, Cin, H, W = x_nchw.shape
  assert Cin == inplanes
  cexp = inplanes * t
  cdt = jnp.dtype(compute_dtype)

  s1, b1 = _fold_bn(*params["bn1"])
  s2, b2 = _fold_bn(*params["bn2"])
  s3, b3 = _fold_bn(*params["bn3"])

  # layout: NCHW -> NHWC (channels on the lane axis)
  x = jnp.transpose(x_nchw, (0, 2, 3, 1)).astype(cdt)

  Ho = (H - 1) // stride + 1
  Wo = (W - 1) // stride + 1
  Wo_pad = _round_up(Wo, 8)
  # Pad only the SMALL Cin-channel input: 1-px conv halo + right-pad so that
  # (a) every in-kernel reshape is sublane-tile aligned (width % 8 == 0) and
  # (b) all depthwise taps for the padded output width stay in range.
  Wpad = _round_up(max(W + 2, (Wo_pad - 1) * stride + 3), 8)
  Hp = H + 2
  xp = jnp.pad(x, ((0, 0), (1, 1), (1, Wpad - (W + 1)), (0, 0)))

  th = _pick_row_tile(Ho, Wpad, cexp, stride, cdt.itemsize, max_rows_per_tile)
  n_h = Ho // th
  rows_in = (th - 1) * stride + 3

  w1 = params["w1"].astype(cdt)
  w2 = params["w2"].astype(cdt)
  w3 = params["w3"].astype(cdt)
  s1r, b1r = s1.reshape(1, cexp), b1.reshape(1, cexp)
  s2r, b2r = s2.reshape(1, cexp), b2.reshape(1, cexp)
  s3r, b3r = s3.reshape(1, outplanes), b3.reshape(1, outplanes)

  add_residual = (stride == 1 and inplanes == outplanes)

  kernel = functools.partial(
      _fused_bottleneck_kernel, stride=stride, th=th, h_img=H, w_img=W,
      wo=Wo, wo_pad=Wo_pad, add_residual=add_residual)

  # Explicit VMEM budget from the chosen tiles (scoped defaults are 16/32 MiB;
  # cap at 64 MiB so the same number is valid on v7x's smaller physical VMEM).
  vmem_bytes = int(
      2 * Hp * Wpad * Cin * cdt.itemsize              # input slab, double-buffered
      + 2 * th * Wo * outplanes * cdt.itemsize        # output tile, double-buffered
      + rows_in * Wpad * cexp * cdt.itemsize          # expanded-activation scratch
      + 3 * rows_in * Wpad * cexp * 4                 # f32 temporaries (expand / dw acc)
      + 4 * (Cin * cexp + cexp * outplanes + 11 * cexp + 2 * outplanes) * 4)
  vmem_limit = int(min(max(2 * vmem_bytes, 4 << 20), 64 << 20))

  out = pl.pallas_call(
      kernel,
      out_shape=jax.ShapeDtypeStruct((N, Ho, Wo, outplanes), cdt),
      grid_spec=pltpu.PrefetchScalarGridSpec(
          num_scalar_prefetch=0,
          grid=(N, n_h),
          in_specs=[
              pl.BlockSpec((1, Hp, Wpad, Cin), lambda n, h: (n, 0, 0, 0)),
              pl.BlockSpec((Cin, cexp), lambda n, h: (0, 0)),
              pl.BlockSpec((1, cexp), lambda n, h: (0, 0)),
              pl.BlockSpec((1, cexp), lambda n, h: (0, 0)),
              pl.BlockSpec((3, 3, cexp), lambda n, h: (0, 0, 0)),
              pl.BlockSpec((1, cexp), lambda n, h: (0, 0)),
              pl.BlockSpec((1, cexp), lambda n, h: (0, 0)),
              pl.BlockSpec((cexp, outplanes), lambda n, h: (0, 0)),
              pl.BlockSpec((1, outplanes), lambda n, h: (0, 0)),
              pl.BlockSpec((1, outplanes), lambda n, h: (0, 0)),
          ],
          out_specs=pl.BlockSpec((1, th, Wo, outplanes), lambda n, h: (n, h, 0, 0)),
          scratch_shapes=[pltpu.VMEM((rows_in, Wpad, cexp), cdt)],
      ),
      compiler_params=pltpu.CompilerParams(
          dimension_semantics=("parallel", "parallel"),
          vmem_limit_bytes=vmem_limit),
  )(xp, w1, s1r, b1r, w2, s2r, b2r, w3, s3r, b3r)

  # back to NCHW to match the PyTorch output convention
  return jnp.transpose(out, (0, 3, 1, 2))


# ---------------------------------------------------------------------------
# Pure-JAX reference (eval-mode BN), used as the correctness oracle
# ---------------------------------------------------------------------------
def reference_forward(x_nchw, params, *, inplanes, outplanes, stride, t):
  x = jnp.transpose(x_nchw, (0, 2, 3, 1)).astype(jnp.float32)
  s1, b1 = _fold_bn(*params["bn1"])
  s2, b2 = _fold_bn(*params["bn2"])
  s3, b3 = _fold_bn(*params["bn3"])

  h = jnp.einsum("nhwc,cd->nhwd", x, params["w1"]) * s1 + b1
  h = jnp.clip(h, 0.0, 6.0)

  C = inplanes * t
  w_dw = params["w2"].reshape(3, 3, 1, C)  # HWIO, feature_group_count=C
  h = jax.lax.conv_general_dilated(
      h, w_dw, window_strides=(stride, stride), padding=((1, 1), (1, 1)),
      dimension_numbers=("NHWC", "HWIO", "NHWC"), feature_group_count=C)
  h = jnp.clip(h * s2 + b2, 0.0, 6.0)

  out = jnp.einsum("nhwc,cd->nhwd", h, params["w3"]) * s3 + b3
  if stride == 1 and inplanes == outplanes:
    out = out + x
  return jnp.transpose(out, (0, 3, 1, 2))


if __name__ == "__main__":
  # Small config consistent with the module: inplanes=4, outplanes=4, t=6, stride=1
  N, Cin, H, W = 2, 4, 16, 16
  inplanes, outplanes, stride, t = 4, 4, 1, 6

  key = jax.random.PRNGKey(0)
  kx, kp = jax.random.split(key)
  x = jax.random.normal(kx, (N, Cin, H, W), jnp.float32)  # NCHW like PyTorch
  params = init_params(kp, inplanes, outplanes, t)

  ref = reference_forward(
      x, params, inplanes=inplanes, outplanes=outplanes, stride=stride, t=t)

  # f32 fused kernel (tight numerical check)
  out = linear_bottleneck_forward(
      x, params, inplanes=inplanes, outplanes=outplanes, stride=stride, t=t,
      compute_dtype=jnp.float32)
  out = jax.block_until_ready(out)
  assert out.shape == (N, outplanes, H, W), out.shape
  assert jnp.allclose(out, ref, rtol=1e-3, atol=1e-3), "f32 mismatch vs reference"

  # bf16 fused kernel (memory-bound fast path; loose check vs f32 reference)
  out_bf16 = linear_bottleneck_forward(
      x, params, inplanes=inplanes, outplanes=outplanes, stride=stride, t=t,
      compute_dtype=jnp.bfloat16)
  out_bf16 = jax.block_until_ready(out_bf16).astype(jnp.float32)
  assert out_bf16.shape == (N, outplanes, H, W), out_bf16.shape
  assert jnp.allclose(out_bf16, ref, rtol=1e-1, atol=2e-1), "bf16 mismatch vs reference"

  print("KERNEL_OK")
</pallas_src>

<mosaic_0001>
module attributes {stable_mosaic.version = 11 : i64} {
  func.func @_fused_bottleneck_kernel(%arg0: i32, %arg1: i32, %arg2: memref<1x18x24x4xf32, #tpu.memory_space<vmem>>, %arg3: memref<4x24xf32, #tpu.memory_space<vmem>>, %arg4: memref<1x24xf32, #tpu.memory_space<vmem>>, %arg5: memref<1x24xf32, #tpu.memory_space<vmem>>, %arg6: memref<3x3x24xf32, #tpu.memory_space<vmem>>, %arg7: memref<1x24xf32, #tpu.memory_space<vmem>>, %arg8: memref<1x24xf32, #tpu.memory_space<vmem>>, %arg9: memref<24x4xf32, #tpu.memory_space<vmem>>, %arg10: memref<1x4xf32, #tpu.memory_space<vmem>>, %arg11: memref<1x4xf32, #tpu.memory_space<vmem>>, %arg12: memref<1x8x16x4xf32, #tpu.memory_space<vmem>>, %arg13: memref<10x24x24xf32, #tpu.memory_space<vmem>>) attributes {dimension_semantics = [#tpu.dimension_semantics<parallel>, #tpu.dimension_semantics<parallel>], iteration_bounds = array<i64: 2, 2>, scalar_prefetch = 0 : i64, scratch_operands = 1 : i64, tpu.core_type = #tpu.core_type<tc>, window_params = [{transform_indices = @transform_0, window_bounds = array<i64: 1, 18, 24, 4>}, {pipeline_mode = #tpu.pipeline_mode<synchronous>, transform_indices = @transform_1, window_bounds = array<i64: 4, 24>}, {pipeline_mode = #tpu.pipeline_mode<synchronous>, transform_indices = @transform_2, window_bounds = array<i64: 1, 24>}, {pipeline_mode = #tpu.pipeline_mode<synchronous>, transform_indices = @transform_3, window_bounds = array<i64: 1, 24>}, {pipeline_mode = #tpu.pipeline_mode<synchronous>, transform_indices = @transform_4, window_bounds = array<i64: 3, 3, 24>}, {pipeline_mode = #tpu.pipeline_mode<synchronous>, transform_indices = @transform_5, window_bounds = array<i64: 1, 24>}, {pipeline_mode = #tpu.pipeline_mode<synchronous>, transform_indices = @transform_6, window_bounds = array<i64: 1, 24>}, {pipeline_mode = #tpu.pipeline_mode<synchronous>, transform_indices = @transform_7, window_bounds = array<i64: 24, 4>}, {pipeline_mode = #tpu.pipeline_mode<synchronous>, transform_indices = @transform_8, window_bounds = array<i64: 1, 4>}, {pipeline_mode = #tpu.pipeline_mode<synchronous>, transform_indices = @transform_9, window_bounds = array<i64: 1, 4>}, {transform_indices = @transform_10, window_bounds = array<i64: 1, 8, 16, 4>}]} {
    %c8_i32 = arith.constant 8 : i32
    %0 = arith.muli %arg1, %c8_i32 : i32
    %1 = tpu.assume_multiple %0, 8 : i32
    %c0 = arith.constant 0 : index
    %2 = arith.index_cast %1 : i32 to index
    %c0_0 = arith.constant 0 : index
    %c0_1 = arith.constant 0 : index
    %3 = vector.load %arg2[%c0, %2, %c0_0, %c0_1] : memref<1x18x24x4xf32, #tpu.memory_space<vmem>>, vector<1x10x24x4xf32>
    %4 = vector.shape_cast %3 : vector<1x10x24x4xf32> to vector<10x24x4xf32>
    %5 = vector.shape_cast %4 : vector<10x24x4xf32> to vector<240x4xf32>
    %c0_2 = arith.constant 0 : index
    %c0_3 = arith.constant 0 : index
    %6 = vector.load %arg3[%c0_2, %c0_3] : memref<4x24xf32, #tpu.memory_space<vmem>>, vector<4x24xf32>
    %cst = arith.constant dense<0.000000e+00> : vector<240x24xf32>
    %7 = tpu.matmul %5, %6, %cst {dimension_numbers = #tpu.dot_dimension_numbers<[1], [0], [0], [1], [0, 0, 1, 1], [], []>} : vector<240x4xf32>, vector<4x24xf32>, vector<240x24xf32> -> vector<240x24xf32>
    %c0_4 = arith.constant 0 : index
    %c0_5 = arith.constant 0 : index
    %8 = vector.load %arg4[%c0_4, %c0_5] : memref<1x24xf32, #tpu.memory_space<vmem>>, vector<1x24xf32>
    %9 = vector.broadcast %8 : vector<1x24xf32> to vector<240x24xf32>
    %10 = arith.mulf %7, %9 : vector<240x24xf32>
    %c0_6 = arith.constant 0 : index
    %c0_7 = arith.constant 0 : index
    %11 = vector.load %arg5[%c0_6, %c0_7] : memref<1x24xf32, #tpu.memory_space<vmem>>, vector<1x24xf32>
    %12 = vector.broadcast %11 : vector<1x24xf32> to vector<240x24xf32>
    %13 = arith.addf %10, %12 : vector<240x24xf32>
    %cst_8 = arith.constant 0.000000e+00 : f32
    %cst_9 = arith.constant 6.000000e+00 : f32
    %14 = vector.broadcast %cst_8 : f32 to vector<240x24xf32>
    %15 = arith.maximumf %14, %13 : vector<240x24xf32>
    %16 = vector.broadcast %cst_9 : f32 to vector<240x24xf32>
    %17 = arith.minimumf %16, %15 : vector<240x24xf32>
    %18 = vector.shape_cast %17 : vector<240x24xf32> to vector<10x24x24xf32>
    %19 = tpu.iota {dimensions = array<i32: 0>} : vector<10x24x1xi32>
    %20 = vector.broadcast %1 : i32 to vector<10x24x1xi32>
    %21 = arith.addi %19, %20 : vector<10x24x1xi32>
    %22 = tpu.iota {dimensions = array<i32: 1>} : vector<10x24x1xi32>
    %c1_i32 = arith.constant 1 : i32
    %23 = vector.broadcast %c1_i32 : i32 to vector<10x24x1xi32>
    %24 = arith.cmpi sge, %21, %23 : vector<10x24x1xi32>
    %c16_i32 = arith.constant 16 : i32
    %25 = vector.broadcast %c16_i32 : i32 to vector<10x24x1xi32>
    %26 = arith.cmpi sle, %21, %25 : vector<10x24x1xi32>
    %27 = arith.andi %24, %26 : vector<10x24x1xi1>
    %c1_i32_10 = arith.constant 1 : i32
    %28 = vector.broadcast %c1_i32_10 : i32 to vector<10x24x1xi32>
    %29 = arith.cmpi sge, %22, %28 : vector<10x24x1xi32>
    %30 = arith.andi %27, %29 : vector<10x24x1xi1>
    %c16_i32_11 = arith.constant 16 : i32
    %31 = vector.broadcast %c16_i32_11 : i32 to vector<10x24x1xi32>
    %32 = arith.cmpi sle, %22, %31 : vector<10x24x1xi32>
    %33 = arith.andi %30, %32 : vector<10x24x1xi1>
    %cst_12 = arith.constant 0.000000e+00 : f32
    %34 = vector.shape_cast %33 : vector<10x24x1xi1> to vector<10x24x1xi1>
    %35 = vector.broadcast %34 : vector<10x24x1xi1> to vector<10x24x24xi1>
    %36 = vector.broadcast %cst_12 : f32 to vector<10x24x24xf32>
    %37 = arith.select %35, %18, %36 : vector<10x24x24xi1>, vector<10x24x24xf32>
    %c0_13 = arith.constant 0 : index
    %c0_14 = arith.constant 0 : index
    %c0_15 = arith.constant 0 : index
    %38 = vector.load %arg13[%c0_13, %c0_14, %c0_15] : memref<10x24x24xf32, #tpu.memory_space<vmem>>, vector<10x24x24xf32>
    tpu.vector_store %arg13[%c0_13, %c0_14, %c0_15], %37 {strides = array<i32>} : memref<10x24x24xf32, #tpu.memory_space<vmem>>, vector<10x24x24xf32>,
    %cst_16 = arith.constant 0.000000e+00 : f32
    %39 = vector.broadcast %cst_16 : f32 to vector<8x16x24xf32>
    %c0_17 = arith.constant 0 : index
    %c0_18 = arith.constant 0 : index
    %c0_19 = arith.constant 0 : index
    %40 = vector.load %arg13[%c0_17, %c0_18, %c0_19] : memref<10x24x24xf32, #tpu.memory_space<vmem>>, vector<8x16x24xf32>
    %c0_20 = arith.constant 0 : index
    %c0_21 = arith.constant 0 : index
    %c0_22 = arith.constant 0 : index
    %41 = vector.load %arg6[%c0_20, %c0_21, %c0_22] : memref<3x3x24xf32, #tpu.memory_space<vmem>>, vector<1x1x24xf32>
    %42 = vector.shape_cast %41 : vector<1x1x24xf32> to vector<24xf32>
    %43 = vector.shape_cast %42 : vector<24xf32> to vector<1x1x24xf32>
    %44 = vector.broadcast %43 : vector<1x1x24xf32> to vector<8x16x24xf32>
    %45 = arith.mulf %40, %44 : vector<8x16x24xf32>
    %46 = arith.addf %39, %45 : vector<8x16x24xf32>
    %c0_23 = arith.constant 0 : index
    %c1 = arith.constant 1 : index
    %c0_24 = arith.constant 0 : index
    %47 = vector.load %arg13[%c0_23, %c1, %c0_24] : memref<10x24x24xf32, #tpu.memory_space<vmem>>, vector<8x16x24xf32>
    %c0_25 = arith.constant 0 : index
    %c1_26 = arith.constant 1 : index
    %c0_27 = arith.constant 0 : index
    %48 = vector.load %arg6[%c0_25, %c1_26, %c0_27] : memref<3x3x24xf32, #tpu.memory_space<vmem>>, vector<1x1x24xf32>
    %49 = vector.shape_cast %48 : vector<1x1x24xf32> to vector<24xf32>
    %50 = vector.shape_cast %49 : vector<24xf32> to vector<1x1x24xf32>
    %51 = vector.broadcast %50 : vector<1x1x24xf32> to vector<8x16x24xf32>
    %52 = arith.mulf %47, %51 : vector<8x16x24xf32>
    %53 = arith.addf %46, %52 : vector<8x16x24xf32>
    %c0_28 = arith.constant 0 : index
    %c2 = arith.constant 2 : index
    %c0_29 = arith.constant 0 : index
    %54 = vector.load %arg13[%c0_28, %c2, %c0_29] : memref<10x24x24xf32, #tpu.memory_space<vmem>>, vector<8x16x24xf32>
    %c0_30 = arith.constant 0 : index
    %c2_31 = arith.constant 2 : index
    %c0_32 = arith.constant 0 : index
    %55 = vector.load %arg6[%c0_30, %c2_31, %c0_32] : memref<3x3x24xf32, #tpu.memory_space<vmem>>, vector<1x1x24xf32>
    %56 = vector.shape_cast %55 : vector<1x1x24xf32> to vector<24xf32>
    %57 = vector.shape_cast %56 : vector<24xf32> to vector<1x1x24xf32>
    %58 = vector.broadcast %57 : vector<1x1x24xf32> to vector<8x16x24xf32>
    %59 = arith.mulf %54, %58 : vector<8x16x24xf32>
    %60 = arith.addf %53, %59 : vector<8x16x24xf32>
    %c1_33 = arith.constant 1 : index
    %c0_34 = arith.constant 0 : index
    %c0_35 = arith.constant 0 : index
    %61 = vector.load %arg13[%c1_33, %c0_34, %c0_35] : memref<10x24x24xf32, #tpu.memory_space<vmem>>, vector<8x16x24xf32>
    %c1_36 = arith.constant 1 : index
    %c0_37 = arith.constant 0 : index
    %c0_38 = arith.constant 0 : index
    %62 = vector.load %arg6[%c1_36, %c0_37, %c0_38] : memref<3x3x24xf32, #tpu.memory_space<vmem>>, vector<1x1x24xf32>
    %63 = vector.shape_cast %62 : vector<1x1x24xf32> to vector<24xf32>
    %64 = vector.shape_cast %63 : vector<24xf32> to vector<1x1x24xf32>
    %65 = vector.broadcast %64 : vector<1x1x24xf32> to vector<8x16x24xf32>
    %66 = arith.mulf %61, %65 : vector<8x16x24xf32>
    %67 = arith.addf %60, %66 : vector<8x16x24xf32>
    %c1_39 = arith.constant 1 : index
    %c1_40 = arith.constant 1 : index
    %c0_41 = arith.constant 0 : index
    %68 = vector.load %arg13[%c1_39, %c1_40, %c0_41] : memref<10x24x24xf32, #tpu.memory_space<vmem>>, vector<8x16x24xf32>
    %c1_42 = arith.constant 1 : index
    %c1_43 = arith.constant 1 : index
    %c0_44 = arith.constant 0 : index
    %69 = vector.load %arg6[%c1_42, %c1_43, %c0_44] : memref<3x3x24xf32, #tpu.memory_space<vmem>>, vector<1x1x24xf32>
    %70 = vector.shape_cast %69 : vector<1x1x24xf32> to vector<24xf32>
    %71 = vector.shape_cast %70 : vector<24xf32> to vector<1x1x24xf32>
    %72 = vector.broadcast %71 : vector<1x1x24xf32> to vector<8x16x24xf32>
    %73 = arith.mulf %68, %72 : vector<8x16x24xf32>
    %74 = arith.addf %67, %73 : vector<8x16x24xf32>
    %c1_45 = arith.constant 1 : index
    %c2_46 = arith.constant 2 : index
    %c0_47 = arith.constant 0 : index
    %75 = vector.load %arg13[%c1_45, %c2_46, %c0_47] : memref<10x24x24xf32, #tpu.memory_space<vmem>>, vector<8x16x24xf32>
    %c1_48 = arith.constant 1 : index
    %c2_49 = arith.constant 2 : index
    %c0_50 = arith.constant 0 : index
    %76 = vector.load %arg6[%c1_48, %c2_49, %c0_50] : memref<3x3x24xf32, #tpu.memory_space<vmem>>, vector<1x1x24xf32>
    %77 = vector.shape_cast %76 : vector<1x1x24xf32> to vector<24xf32>
    %78 = vector.shape_cast %77 : vector<24xf32> to vector<1x1x24xf32>
    %79 = vector.broadcast %78 : vector<1x1x24xf32> to vector<8x16x24xf32>
    %80 = arith.mulf %75, %79 : vector<8x16x24xf32>
    %81 = arith.addf %74, %80 : vector<8x16x24xf32>
    %c2_51 = arith.constant 2 : index
    %c0_52 = arith.constant 0 : index
    %c0_53 = arith.constant 0 : index
    %82 = vector.load %arg13[%c2_51, %c0_52, %c0_53] : memref<10x24x24xf32, #tpu.memory_space<vmem>>, vector<8x16x24xf32>
    %c2_54 = arith.constant 2 : index
    %c0_55 = arith.constant 0 : index
    %c0_56 = arith.constant 0 : index
    %83 = vector.load %arg6[%c2_54, %c0_55, %c0_56] : memref<3x3x24xf32, #tpu.memory_space<vmem>>, vector<1x1x24xf32>
    %84 = vector.shape_cast %83 : vector<1x1x24xf32> to vector<24xf32>
    %85 = vector.shape_cast %84 : vector<24xf32> to vector<1x1x24xf32>
    %86 = vector.broadcast %85 : vector<1x1x24xf32> to vector<8x16x24xf32>
    %87 = arith.mulf %82, %86 : vector<8x16x24xf32>
    %88 = arith.addf %81, %87 : vector<8x16x24xf32>
    %c2_57 = arith.constant 2 : index
    %c1_58 = arith.constant 1 : index
    %c0_59 = arith.constant 0 : index
    %89 = vector.load %arg13[%c2_57, %c1_58, %c0_59] : memref<10x24x24xf32, #tpu.memory_space<vmem>>, vector<8x16x24xf32>
    %c2_60 = arith.constant 2 : index
    %c1_61 = arith.constant 1 : index
    %c0_62 = arith.constant 0 : index
    %90 = vector.load %arg6[%c2_60, %c1_61, %c0_62] : memref<3x3x24xf32, #tpu.memory_space<vmem>>, vector<1x1x24xf32>
    %91 = vector.shape_cast %90 : vector<1x1x24xf32> to vector<24xf32>
    %92 = vector.shape_cast %91 : vector<24xf32> to vector<1x1x24xf32>
    %93 = vector.broadcast %92 : vector<1x1x24xf32> to vector<8x16x24xf32>
    %94 = arith.mulf %89, %93 : vector<8x16x24xf32>
    %95 = arith.addf %88, %94 : vector<8x16x24xf32>
    %c2_63 = arith.constant 2 : index
    %c2_64 = arith.constant 2 : index
    %c0_65 = arith.constant 0 : index
    %96 = vector.load %arg13[%c2_63, %c2_64, %c0_65] : memref<10x24x24xf32, #tpu.memory_space<vmem>>, vector<8x16x24xf32>
    %c2_66 = arith.constant 2 : index
    %c2_67 = arith.constant 2 : index
    %c0_68 = arith.constant 0 : index
    %97 = vector.load %arg6[%c2_66, %c2_67, %c0_68] : memref<3x3x24xf32, #tpu.memory_space<vmem>>, vector<1x1x24xf32>
    %98 = vector.shape_cast %97 : vector<1x1x24xf32> to vector<24xf32>
    %99 = vector.shape_cast %98 : vector<24xf32> to vector<1x1x24xf32>
    %100 = vector.broadcast %99 : vector<1x1x24xf32> to vector<8x16x24xf32>
    %101 = arith.mulf %96, %100 : vector<8x16x24xf32>
    %102 = arith.addf %95, %101 : vector<8x16x24xf32>
    %c0_69 = arith.constant 0 : index
    %c0_70 = arith.constant 0 : index
    %103 = vector.load %arg7[%c0_69, %c0_70] : memref<1x24xf32, #tpu.memory_space<vmem>>, vector<1x24xf32>
    %104 = vector.shape_cast %103 : vector<1x24xf32> to vector<1x1x24xf32>
    %105 = vector.broadcast %104 : vector<1x1x24xf32> to vector<8x16x24xf32>
    %106 = arith.mulf %102, %105 : vector<8x16x24xf32>
    %c0_71 = arith.constant 0 : index
    %c0_72 = arith.constant 0 : index
    %107 = vector.load %arg8[%c0_71, %c0_72] : memref<1x24xf32, #tpu.memory_space<vmem>>, vector<1x24xf32>
    %108 = vector.shape_cast %107 : vector<1x24xf32> to vector<1x1x24xf32>
    %109 = vector.broadcast %108 : vector<1x1x24xf32> to vector<8x16x24xf32>
    %110 = arith.addf %106, %109 : vector<8x16x24xf32>
    %cst_73 = arith.constant 0.000000e+00 : f32
    %cst_74 = arith.constant 6.000000e+00 : f32
    %111 = vector.broadcast %cst_73 : f32 to vector<8x16x24xf32>
    %112 = arith.maximumf %111, %110 : vector<8x16x24xf32>
    %113 = vector.broadcast %cst_74 : f32 to vector<8x16x24xf32>
    %114 = arith.minimumf %113, %112 : vector<8x16x24xf32>
    %115 = vector.shape_cast %114 : vector<8x16x24xf32> to vector<128x24xf32>
    %c0_75 = arith.constant 0 : index
    %c0_76 = arith.constant 0 : index
    %116 = vector.load %arg9[%c0_75, %c0_76] : memref<24x4xf32, #tpu.memory_space<vmem>>, vector<24x4xf32>
    %cst_77 = arith.constant dense<0.000000e+00> : vector<128x4xf32>
    %117 = tpu.matmul %115, %116, %cst_77 {dimension_numbers = #tpu.dot_dimension_numbers<[1], [0], [0], [1], [0, 0, 1, 1], [], []>} : vector<128x24xf32>, vector<24x4xf32>, vector<128x4xf32> -> vector<128x4xf32>
    %c0_78 = arith.constant 0 : index
    %c0_79 = arith.constant 0 : index
    %118 = vector.load %arg10[%c0_78, %c0_79] : memref<1x4xf32, #tpu.memory_space<vmem>>, vector<1x4xf32>
    %119 = vector.broadcast %118 : vector<1x4xf32> to vector<128x4xf32>
    %120 = arith.mulf %117, %119 : vector<128x4xf32>
    %c0_80 = arith.constant 0 : index
    %c0_81 = arith.constant 0 : index
    %121 = vector.load %arg11[%c0_80, %c0_81] : memref<1x4xf32, #tpu.memory_space<vmem>>, vector<1x4xf32>
    %122 = vector.broadcast %121 : vector<1x4xf32> to vector<128x4xf32>
    %123 = arith.addf %120, %122 : vector<128x4xf32>
    %124 = vector.shape_cast %123 : vector<128x4xf32> to vector<8x16x4xf32>
    %c1_i32_82 = arith.constant 1 : i32
    %125 = arith.addi %1, %c1_i32_82 : i32
    %c0_83 = arith.constant 0 : index
    %126 = arith.index_cast %125 : i32 to index
    %c1_84 = arith.constant 1 : index
    %c0_85 = arith.constant 0 : index
    %127 = vector.load %arg2[%c0_83, %126, %c1_84, %c0_85] : memref<1x18x24x4xf32, #tpu.memory_space<vmem>>, vector<1x8x16x4xf32>
    %128 = vector.shape_cast %127 : vector<1x8x16x4xf32> to vector<8x16x4xf32>
    %129 = arith.addf %124, %128 : vector<8x16x4xf32>
    %c0_86 = arith.constant 0 : index
    %c0_87 = arith.constant 0 : index
    %c0_88 = arith.constant 0 : index
    %c0_89 = arith.constant 0 : index
    %130 = vector.load %arg12[%c0_86, %c0_87, %c0_88, %c0_89] : memref<1x8x16x4xf32, #tpu.memory_space<vmem>>, vector<1x8x16x4xf32>
    %131 = vector.shape_cast %130 : vector<1x8x16x4xf32> to vector<8x16x4xf32>
    %132 = vector.shape_cast %129 : vector<8x16x4xf32> to vector<1x8x16x4xf32>
    tpu.vector_store %arg12[%c0_86, %c0_87, %c0_88, %c0_89], %132 {strides = array<i32>} : memref<1x8x16x4xf32, #tpu.memory_space<vmem>>, vector<1x8x16x4xf32>,
    return
  }
  func.func @transform_0(%arg0: i32, %arg1: i32) -> (i32, i32, i32, i32) {
    %c0_i32 = arith.constant 0 : i32
    %c0_i32_0 = arith.constant 0 : i32
    %c0_i32_1 = arith.constant 0 : i32
    %c0_i32_2 = arith.constant 0 : i32
    return %arg0, %c0_i32, %c0_i32_0, %c0_i32_1 : i32, i32, i32, i32
  }
  func.func @transform_1(%arg0: i32, %arg1: i32) -> (i32, i32) {
    %c0_i32 = arith.constant 0 : i32
    %c0_i32_0 = arith.constant 0 : i32
    %c0_i32_1 = arith.constant 0 : i32
    return %c0_i32, %c0_i32_0 : i32, i32
  }
  func.func @transform_2(%arg0: i32, %arg1: i32) -> (i32, i32) {
    %c0_i32 = arith.constant 0 : i32
    %c0_i32_0 = arith.constant 0 : i32
    %c0_i32_1 = arith.constant 0 : i32
    return %c0_i32, %c0_i32_0 : i32, i32
  }
  func.func @transform_3(%arg0: i32, %arg1: i32) -> (i32, i32) {
    %c0_i32 = arith.constant 0 : i32
    %c0_i32_0 = arith.constant 0 : i32
    %c0_i32_1 = arith.constant 0 : i32
    return %c0_i32, %c0_i32_0 : i32, i32
  }
  func.func @transform_4(%arg0: i32, %arg1: i32) -> (i32, i32, i32) {
    %c0_i32 = arith.constant 0 : i32
    %c0_i32_0 = arith.constant 0 : i32
    %c0_i32_1 = arith.constant 0 : i32
    %c0_i32_2 = arith.constant 0 : i32
    return %c0_i32, %c0_i32_0, %c0_i32_1 : i32, i32, i32
  }
  func.func @transform_5(%arg0: i32, %arg1: i32) -> (i32, i32) {
    %c0_i32 = arith.constant 0 : i32
    %c0_i32_0 = arith.constant 0 : i32
    %c0_i32_1 = arith.constant 0 : i32
    return %c0_i32, %c0_i32_0 : i32, i32
  }
  func.func @transform_6(%arg0: i32, %arg1: i32) -> (i32, i32) {
    %c0_i32 = arith.constant 0 : i32
    %c0_i32_0 = arith.constant 0 : i32
    %c0_i32_1 = arith.constant 0 : i32
    return %c0_i32, %c0_i32_0 : i32, i32
  }
  func.func @transform_7(%arg0: i32, %arg1: i32) -> (i32, i32) {
    %c0_i32 = arith.constant 0 : i32
    %c0_i32_0 = arith.constant 0 : i32
    %c0_i32_1 = arith.constant 0 : i32
    return %c0_i32, %c0_i32_0 : i32, i32
  }
  func.func @transform_8(%arg0: i32, %arg1: i32) -> (i32, i32) {
    %c0_i32 = arith.constant 0 : i32
    %c0_i32_0 = arith.constant 0 : i32
    %c0_i32_1 = arith.constant 0 : i32
    return %c0_i32, %c0_i32_0 : i32, i32
  }
  func.func @transform_9(%arg0: i32, %arg1: i32) -> (i32, i32) {
    %c0_i32 = arith.constant 0 : i32
    %c0_i32_0 = arith.constant 0 : i32
    %c0_i32_1 = arith.constant 0 : i32
    return %c0_i32, %c0_i32_0 : i32, i32
  }
  func.func @transform_10(%arg0: i32, %arg1: i32) -> (i32, i32, i32, i32) {
    %c0_i32 = arith.constant 0 : i32
    %c0_i32_0 = arith.constant 0 : i32
    %c0_i32_1 = arith.constant 0 : i32
    return %arg0, %arg1, %c0_i32, %c0_i32_0 : i32, i32, i32, i32
  }
}

</mosaic_0001>

<llo_original>
// kernel: tpu_custom_call.1
$region0: #{tpu_custom_call.1}
  #allocation0 [shape = 'u32[]', space=smem, size = 0x4, offset = 0x4, fixed_abs, tag = 'smem constant byte address 0x4 - core index']
  #allocation1 [shape = 'u32[72,128]{1,0:T(1,128)}', space=vmem, size = 0x9000, scoped, tag = 'internal scratch']
  #allocation2 [shape = 'f32[10,24,24]{2,1,0:T(8,128)}', space=vmem, size = 0x1e000, scoped, tag = 'scratch operand']
  %s0 = inlined_call_operand.vmem [shape: f32[2,18,24,4], index: 0, kind: input, shape index: {}]
  %s1 = inlined_call_operand.vmem [shape: f32[4,24], index: 1, kind: input, shape index: {}]
  %s2 = inlined_call_operand.vmem [shape: f32[1,24], index: 2, kind: input, shape index: {}]
  %s3 = inlined_call_operand.vmem [shape: f32[1,24], index: 3, kind: input, shape index: {}]
  %s4 = inlined_call_operand.vmem [shape: f32[3,3,24], index: 4, kind: input, shape index: {}]
  %s5 = inlined_call_operand.vmem [shape: f32[1,24], index: 5, kind: input, shape index: {}]
  %s6 = inlined_call_operand.vmem [shape: f32[1,24], index: 6, kind: input, shape index: {}]
  %s7 = inlined_call_operand.vmem [shape: f32[24,4], index: 7, kind: input, shape index: {}]
  %s8 = inlined_call_operand.vmem [shape: f32[1,4], index: 8, kind: input, shape index: {}]
  %s9 = inlined_call_operand.vmem [shape: f32[1,4], index: 9, kind: input, shape index: {}]
  %s10 = inlined_call_operand.vmem [shape: f32[2,16,16,4], index: 10, kind: output, shape index: {}]
  %s11 = sld [smem:[#allocation0]]
  $region73: #{tpu_custom_call.1} parent=0
    _
  %s13 = ssub.s32 1, %s11
  %s14 = scalar_select 0, %s13, %s11
  loop: start=0, step=1, limit=6
  $region2: #{tpu_custom_call.1} parent=0 // loop_pre_header
    _
  $region3: #{tpu_custom_call.1} parent=0 // loop_header
    %s16 = sphi 0, %s20
    %p17 = scmp.ge.s32.totalorder %s16, 6
    %s23 = sphi 0, %s35
    %s24 = sphi 0, %s31
    %s25 = sphi 0, %s23
    %s26 = sphi 0, %s24
    %s27 = sphi 0, %s25
    %s28 = sphi 0, %s26
    %s38 = sphi 0, %s40
    %s41 = sphi 0, %s38
    %s42 = sphi 0, %s41
    %s58 = sphi 0, %s42
    %s62 = sphi 0, %s62
    %s64 = sphi 0, %s62
    %s65 = sphi 0, %s64
    %s79 = sphi 0, %s65
    %s83 = sphi 0, %s83
    %s85 = sphi 0, %s83
    %s86 = sphi 0, %s85
    %s100 = sphi 0, %s86
    %s104 = sphi 0, %s104
    %s106 = sphi 0, %s104
    %s107 = sphi 0, %s106
    %s121 = sphi 0, %s107
    %s125 = sphi 0, %s125
    %s127 = sphi 0, %s125
    %s128 = sphi 0, %s127
    %s142 = sphi 0, %s128
    %s146 = sphi 0, %s146
    %s148 = sphi 0, %s146
    %s149 = sphi 0, %s148
    %s163 = sphi 0, %s149
    %s167 = sphi 0, %s167
    %s169 = sphi 0, %s167
    %s170 = sphi 0, %s169
    %s184 = sphi 0, %s170
    %s188 = sphi 0, %s188
    %s190 = sphi 0, %s188
    %s191 = sphi 0, %s190
    %s205 = sphi 0, %s191
    %s209 = sphi 0, %s209
    %s211 = sphi 0, %s209
    %s212 = sphi 0, %s211
    %s226 = sphi 0, %s212
    %s230 = sphi 0, %s230
    %s232 = sphi 0, %s230
    %s233 = sphi 0, %s232
    %s247 = sphi 0, %s233
    %s255 = sphi 0, %s257
    %s258 = sphi 0, %s255
    %s259 = sphi 0, %s258
    %s275 = sphi 0, %s259
  $region4: #{tpu_custom_call.1} parent=0 // loop_header_branch
    %19 = sbr.rel (%p17) target = $region8
  $region5: #{tpu_custom_call.1} parent=0 // loop_body
    %s21 = ssub.s32 %s16, 1
    %s22 = ssub.s32 %s16, 2
    %s29 = sadd.s32 1, %s24
    %p30 = scmp.ge.s32.totalorder %s29, 2
    %s31 = scalar_select %p30, 0, %s29
    %s32 = sadd.s32 1, %s23
    %s33 = scalar_select %p30, %s32, %s23
    %p34 = scmp.ge.s32.totalorder %s33, 2
    %s35 = scalar_select %p34, 0, %s33
    %s36 = ssub.s32 %s23, %s35
    %p37 = scmp.eq.s32.totalorder %s36, 0
    %s39 = sadd.s32 %s38, 1
    %s40 = scalar_select %p37, %s38, %s39
    %p43 = pneg %p37
    %p44 = scmp.eq.s32.totalorder %s16, 3
    %p45 = por %p43, %p44
    %p46 = scmp.ne.s32.totalorder %s38, %s41
    %p47 = scmp.eq.s32.totalorder %s16, 0
    %p48 = por %p46, %p47
    %p49 = scmp.ne.s32.totalorder %s38, %s41
    %p50 = scmp.eq.s32.totalorder %s21, 3
    %p51 = por %p49, %p50
    %p52 = scmp.ne.s32.totalorder %s41, %s42
    %p53 = scmp.eq.s32.totalorder %s21, 0
    %p54 = por %p52, %p53
    %p55 = scmp.ne.s32.totalorder %s41, %s42
    %p56 = scmp.eq.s32.totalorder %s22, 3
    %p57 = por %p55, %p56
    %p59 = scmp.ne.s32.totalorder %s42, %s58
    %p60 = scmp.eq.s32.totalorder %s22, 0
    %p61 = por %p59, %p60
    %s63 = sadd.s32 %s62, 1
    %p66 = scmp.eq.s32.totalorder %s16, 3
    %p67 = scmp.ne.s32.totalorder %s62, %s64
    %p68 = scmp.eq.s32.totalorder %s16, 0
    %p69 = por %p67, %p68
    %p70 = scmp.ne.s32.totalorder %s62, %s64
    %p71 = scmp.eq.s32.totalorder %s21, 3
    %p72 = por %p70, %p71
    %p73 = scmp.ne.s32.totalorder %s64, %s65
    %p74 = scmp.eq.s32.totalorder %s21, 0
    %p75 = por %p73, %p74
    %p76 = scmp.ne.s32.totalorder %s64, %s65
    %p77 = scmp.eq.s32.totalorder %s22, 3
    %p78 = por %p76, %p77
    %p80 = scmp.ne.s32.totalorder %s65, %s79
    %p81 = scmp.eq.s32.totalorder %s22, 0
    %p82 = por %p80, %p81
    %s84 = sadd.s32 %s83, 1
    %p87 = scmp.eq.s32.totalorder %s16, 3
    %p88 = scmp.ne.s32.totalorder %s83, %s85
    %p89 = scmp.eq.s32.totalorder %s16, 0
    %p90 = por %p88, %p89
    %p91 = scmp.ne.s32.totalorder %s83, %s85
    %p92 = scmp.eq.s32.totalorder %s21, 3
    %p93 = por %p91, %p92
    %p94 = scmp.ne.s32.totalorder %s85, %s86
    %p95 = scmp.eq.s32.totalorder %s21, 0
    %p96 = por %p94, %p95
    %p97 = scmp.ne.s32.totalorder %s85, %s86
    %p98 = scmp.eq.s32.totalorder %s22, 3
    %p99 = por %p97, %p98
    %p101 = scmp.ne.s32.totalorder %s86, %s100
    %p102 = scmp.eq.s32.totalorder %s22, 0
    %p103 = por %p101, %p102
    %s105 = sadd.s32 %s104, 1
    %p108 = scmp.eq.s32.totalorder %s16, 3
    %p109 = scmp.ne.s32.totalorder %s104, %s106
    %p110 = scmp.eq.s32.totalorder %s16, 0
    %p111 = por %p109, %p110
    %p112 = scmp.ne.s32.totalorder %s104, %s106
    %p113 = scmp.eq.s32.totalorder %s21, 3
    %p114 = por %p112, %p113
    %p115 = scmp.ne.s32.totalorder %s106, %s107
    %p116 = scmp.eq.s32.totalorder %s21, 0
    %p117 = por %p115, %p116
    %p118 = scmp.ne.s32.totalorder %s106, %s107
    %p119 = scmp.eq.s32.totalorder %s22, 3
    %p120 = por %p118, %p119
    %p122 = scmp.ne.s32.totalorder %s107, %s121
    %p123 = scmp.eq.s32.totalorder %s22, 0
    %p124 = por %p122, %p123
    %s126 = sadd.s32 %s125, 1
    %p129 = scmp.eq.s32.totalorder %s16, 3
    %p130 = scmp.ne.s32.totalorder %s125, %s127
    %p131 = scmp.eq.s32.totalorder %s16, 0
    %p132 = por %p130, %p131
    %p133 = scmp.ne.s32.totalorder %s125, %s127
    %p134 = scmp.eq.s32.totalorder %s21, 3
    %p135 = por %p133, %p134
    %p136 = scmp.ne.s32.totalorder %s127, %s128
    %p137 = scmp.eq.s32.totalorder %s21, 0
    %p138 = por %p136, %p137
    %p139 = scmp.ne.s32.totalorder %s127, %s128
    %p140 = scmp.eq.s32.totalorder %s22, 3
    %p141 = por %p139, %p140
    %p143 = scmp.ne.s32.totalorder %s128, %s142
    %p144 = scmp.eq.s32.totalorder %s22, 0
    %p145 = por %p143, %p144
    %s147 = sadd.s32 %s146, 1
    %p150 = scmp.eq.s32.totalorder %s16, 3
    %p151 = scmp.ne.s32.totalorder %s146, %s148
    %p152 = scmp.eq.s32.totalorder %s16, 0
    %p153 = por %p151, %p152
    %p154 = scmp.ne.s32.totalorder %s146, %s148
    %p155 = scmp.eq.s32.totalorder %s21, 3
    %p156 = por %p154, %p155
    %p157 = scmp.ne.s32.totalorder %s148, %s149
    %p158 = scmp.eq.s32.totalorder %s21, 0
    %p159 = por %p157, %p158
    %p160 = scmp.ne.s32.totalorder %s148, %s149
    %p161 = scmp.eq.s32.totalorder %s22, 3
    %p162 = por %p160, %p161
    %p164 = scmp.ne.s32.totalorder %s149, %s163
    %p165 = scmp.eq.s32.totalorder %s22, 0
    %p166 = por %p164, %p165
    %s168 = sadd.s32 %s167, 1
    %p171 = scmp.eq.s32.totalorder %s16, 3
    %p172 = scmp.ne.s32.totalorder %s167, %s169
    %p173 = scmp.eq.s32.totalorder %s16, 0
    %p174 = por %p172, %p173
    %p175 = scmp.ne.s32.totalorder %s167, %s169
    %p176 = scmp.eq.s32.totalorder %s21, 3
    %p177 = por %p175, %p176
    %p178 = scmp.ne.s32.totalorder %s169, %s170
    %p179 = scmp.eq.s32.totalorder %s21, 0
    %p180 = por %p178, %p179
    %p181 = scmp.ne.s32.totalorder %s169, %s170
    %p182 = scmp.eq.s32.totalorder %s22, 3
    %p183 = por %p181, %p182
    %p185 = scmp.ne.s32.totalorder %s170, %s184
    %p186 = scmp.eq.s32.totalorder %s22, 0
    %p187 = por %p185, %p186
    %s189 = sadd.s32 %s188, 1
    %p192 = scmp.eq.s32.totalorder %s16, 3
    %p193 = scmp.ne.s32.totalorder %s188, %s190
    %p194 = scmp.eq.s32.totalorder %s16, 0
    %p195 = por %p193, %p194
    %p196 = scmp.ne.s32.totalorder %s188, %s190
    %p197 = scmp.eq.s32.totalorder %s21, 3
    %p198 = por %p196, %p197
    %p199 = scmp.ne.s32.totalorder %s190, %s191
    %p200 = scmp.eq.s32.totalorder %s21, 0
    %p201 = por %p199, %p200
    %p202 = scmp.ne.s32.totalorder %s190, %s191
    %p203 = scmp.eq.s32.totalorder %s22, 3
    %p204 = por %p202, %p203
    %p206 = scmp.ne.s32.totalorder %s191, %s205
    %p207 = scmp.eq.s32.totalorder %s22, 0
    %p208 = por %p206, %p207
    %s210 = sadd.s32 %s209, 1
    %p213 = scmp.eq.s32.totalorder %s16, 3
    %p214 = scmp.ne.s32.totalorder %s209, %s211
    %p215 = scmp.eq.s32.totalorder %s16, 0
    %p216 = por %p214, %p215
    %p217 = scmp.ne.s32.totalorder %s209, %s211
    %p218 = scmp.eq.s32.totalorder %s21, 3
    %p219 = por %p217, %p218
    %p220 = scmp.ne.s32.totalorder %s211, %s212
    %p221 = scmp.eq.s32.totalorder %s21, 0
    %p222 = por %p220, %p221
    %p223 = scmp.ne.s32.totalorder %s211, %s212
    %p224 = scmp.eq.s32.totalorder %s22, 3
    %p225 = por %p223, %p224
    %p227 = scmp.ne.s32.totalorder %s212, %s226
    %p228 = scmp.eq.s32.totalorder %s22, 0
    %p229 = por %p227, %p228
    %s231 = sadd.s32 %s230, 1
    %p234 = scmp.eq.s32.totalorder %s16, 3
    %p235 = scmp.ne.s32.totalorder %s230, %s232
    %p236 = scmp.eq.s32.totalorder %s16, 0
    %p237 = por %p235, %p236
    %p238 = scmp.ne.s32.totalorder %s230, %s232
    %p239 = scmp.eq.s32.totalorder %s21, 3
    %p240 = por %p238, %p239
    %p241 = scmp.ne.s32.totalorder %s232, %s233
    %p242 = scmp.eq.s32.totalorder %s21, 0
    %p243 = por %p241, %p242
    %p244 = scmp.ne.s32.totalorder %s232, %s233
    %p245 = scmp.eq.s32.totalorder %s22, 3
    %p246 = por %p244, %p245
    %p248 = scmp.ne.s32.totalorder %s233, %s247
    %p249 = scmp.eq.s32.totalorder %s22, 0
    %p250 = por %p248, %p249
    %s251 = ssub.s32 %s23, %s35
    %s252 = ssub.s32 %s24, %s31
    %s253 = sor.u32 %s251, %s252
    %p254 = scmp.eq.s32.totalorder %s253, 0
    %s256 = sadd.s32 %s255, 1
    %s257 = scalar_select %p254, %s255, %s256
    %p260 = pneg %p254
    %p261 = scmp.eq.s32.totalorder %s16, 3
    %p262 = por %p260, %p261
    %p263 = scmp.ne.s32.totalorder %s255, %s258
    %p264 = scmp.eq.s32.totalorder %s16, 0
    %p265 = por %p263, %p264
    %p266 = scmp.ne.s32.totalorder %s255, %s258
    %p267 = scmp.eq.s32.totalorder %s21, 3
    %p268 = por %p266, %p267
    %p269 = scmp.ne.s32.totalorder %s258, %s259
    %p270 = scmp.eq.s32.totalorder %s21, 0
    %p271 = por %p269, %p270
    %p272 = scmp.ne.s32.totalorder %s258, %s259
    %p273 = scmp.eq.s32.totalorder %s22, 3
    %p274 = por %p272, %p273
    %p276 = scmp.ne.s32.totalorder %s259, %s275
    %p277 = scmp.eq.s32.totalorder %s22, 0
    %p278 = por %p276, %p277
    %p279 = scmp.le.s32.totalorder 1, %s16
    %p280 = scmp.lt.s32.totalorder %s16, 5
    %p281 = pnand %p279, %p280
    %p282 = pneg %p281
    // Predicated region
    $region9: #{tpu_custom_call.1} parent=5 // pred_check
      _
    $region10: #{tpu_custom_call.1} parent=5 // pred_check_branch
      %284 = sbr.rel (%p281) target = $region12
    $region11: #{tpu_custom_call.1} parent=5 // pred_region
      %s285 = ssub.s32 %s16, 1
      // Predicated region
      $region13: #{tpu_custom_call.1} parent=11 // pred_check
        %p286 = pneg %p75
      $region14: #{tpu_custom_call.1} parent=11 // pred_check_branch
        %288 = sbr.rel (%p286) target = $region16
      $region15: #{tpu_custom_call.1} parent=11 // pred_region
        _
      $region16: #{tpu_custom_call.1} parent=11 // pred_fallthru
        _
      // Predicated region
      $region17: #{tpu_custom_call.1} parent=11 // pred_check
        %p289 = pneg %p96
      $region18: #{tpu_custom_call.1} parent=11 // pred_check_branch
        %291 = sbr.rel (%p289) target = $region20
      $region19: #{tpu_custom_call.1} parent=11 // pred_region
        _
      $region20: #{tpu_custom_call.1} parent=11 // pred_fallthru
        _
      // Predicated region
      $region21: #{tpu_custom_call.1} parent=11 // pred_check
        %p292 = pneg %p117
      $region22: #{tpu_custom_call.1} parent=11 // pred_check_branch
        %294 = sbr.rel (%p292) target = $region24
      $region23: #{tpu_custom_call.1} parent=11 // pred_region
        _
      $region24: #{tpu_custom_call.1} parent=11 // pred_fallthru
        _
      // Predicated region
      $region25: #{tpu_custom_call.1} parent=11 // pred_check
        %p295 = pneg %p138
      $region26: #{tpu_custom_call.1} parent=11 // pred_check_branch
        %297 = sbr.rel (%p295) target = $region28
      $region27: #{tpu_custom_call.1} parent=11 // pred_region
        _
      $region28: #{tpu_custom_call.1} parent=11 // pred_fallthru
        _
      // Predicated region
      $region29: #{tpu_custom_call.1} parent=11 // pred_check
        %p298 = pneg %p159
      $region30: #{tpu_custom_call.1} parent=11 // pred_check_branch
        %300 = sbr.rel (%p298) target = $region32
      $region31: #{tpu_custom_call.1} parent=11 // pred_region
        _
      $region32: #{tpu_custom_call.1} parent=11 // pred_fallthru
        _
      // Predicated region
      $region33: #{tpu_custom_call.1} parent=11 // pred_check
        %p301 = pneg %p180
      $region34: #{tpu_custom_call.1} parent=11 // pred_check_branch
        %303 = sbr.rel (%p301) target = $region36
      $region35: #{tpu_custom_call.1} parent=11 // pred_region
        _
      $region36: #{tpu_custom_call.1} parent=11 // pred_fallthru
        _
      // Predicated region
      $region37: #{tpu_custom_call.1} parent=11 // pred_check
        %p304 = pneg %p201
      $region38: #{tpu_custom_call.1} parent=11 // pred_check_branch
        %306 = sbr.rel (%p304) target = $region40
      $region39: #{tpu_custom_call.1} parent=11 // pred_region
        _
      $region40: #{tpu_custom_call.1} parent=11 // pred_fallthru
        _
      // Predicated region
      $region41: #{tpu_custom_call.1} parent=11 // pred_check
        %p307 = pneg %p222
      $region42: #{tpu_custom_call.1} parent=11 // pred_check_branch
        %309 = sbr.rel (%p307) target = $region44
      $region43: #{tpu_custom_call.1} parent=11 // pred_region
        _
      $region44: #{tpu_custom_call.1} parent=11 // pred_fallthru
        _
      // Predicated region
      $region45: #{tpu_custom_call.1} parent=11 // pred_check
        %p310 = pneg %p243
      $region46: #{tpu_custom_call.1} parent=11 // pred_check_branch
        %312 = sbr.rel (%p310) target = $region48
      $region47: #{tpu_custom_call.1} parent=11 // pred_region
        _
      $region48: #{tpu_custom_call.1} parent=11 // pred_fallthru
        _
    $region12: #{tpu_custom_call.1} parent=5 // pred_fallthru
      _
    %p313 = scmp.lt.s32.totalorder %s16, 4
    // Predicated region
    $region49: #{tpu_custom_call.1} parent=5 // pred_check
      %p314 = pneg %p313
    $region50: #{tpu_custom_call.1} parent=5 // pred_check_branch
      %316 = sbr.rel (%p314) target = $region52
    $region51: #{tpu_custom_call.1} parent=5 // pred_region
      // Predicated region
      $region53: #{tpu_custom_call.1} parent=51 // pred_check
        %p317 = pneg %p48
      $region54: #{tpu_custom_call.1} parent=51 // pred_check_branch
        %319 = sbr.rel (%p317) target = $region56
      $region55: #{tpu_custom_call.1} parent=51 // pred_region
        %p320 = scmp.lt.s32.totalorder %s23, 1
        %s321 = scalar_select %p320, %s23, 1
        %s322 = smul.addr %s321, 54
        %s323 = smul.addr %s322, 8
        %s324 = scalar_lea.vmem %s0, %s323
      $region56: #{tpu_custom_call.1} parent=51 // pred_fallthru
        _
    $region52: #{tpu_custom_call.1} parent=5 // pred_fallthru
      _
    %p325 = scmp.le.s32.totalorder 1, %s16
    %p326 = scmp.lt.s32.totalorder %s16, 5
    %p327 = pnand %p325, %p326
    %p328 = pneg %p327
    // Predicated region
    $region57: #{tpu_custom_call.1} parent=5 // pred_check
      _
    $region58: #{tpu_custom_call.1} parent=5 // pred_check_branch
      %330 = sbr.rel (%p327) target = $region60
    $region59: #{tpu_custom_call.1} parent=5 // pred_region
      %s331 = ssub.s32 %s16, 1
      %p332 = scmp.lt.s32.totalorder %s25, 1
      %s333 = scalar_select %p332, %s25, 1
      %s334 = smul.addr %s333, 54
      %s335 = smul.addr %s334, 8
      %s336 = scalar_lea.vmem %s0, %s335
      %p337 = pneg %p54
      %p338 = pneg %p51
      %p339 = pneg %p75
      %p340 = pneg %p72
      %p341 = pneg %p96
      %p342 = pneg %p93
      %p343 = pneg %p117
      %p344 = pneg %p114
      %p345 = pneg %p138
      %p346 = pneg %p135
      %p347 = pneg %p159
      %p348 = pneg %p156
      %p349 = pneg %p180
      %p350 = pneg %p177
      %p351 = pneg %p201
      %p352 = pneg %p198
      %p353 = pneg %p222
      %p354 = pneg %p219
      %p355 = pneg %p243
      %p356 = pneg %p240
      %p357 = pneg %p271
      %p358 = pneg %p268
      %s359 = smul.u32 8, %s26
      %p360 = scmp.lt.s32.totalorder %s25, 1
      %s361 = scalar_select %p360, %s25, 1
      %p362 = scmp.lt.s32.totalorder %s359, 15
      %s363 = scalar_select %p362, %s359, 15
      %s364 = smul.addr %s363, 2
      %s365 = smul.addr %s361, 32
      %s366 = sadd.s32 %s364, %s365
      %s367 = smul.addr %s366, 8
      %s368 = scalar_lea.vmem %s10, %s367
      %p369 = scmp.lt.s32.totalorder %s25, 1
      %s370 = scalar_select %p369, %s25, 1
      %s371 = smul.addr %s370, 54
      %s372 = smul.addr %s371, 8
      %s373 = scalar_lea.vmem %s0, %s372
      %s374 = smul.u32 8, %s26
      %p375 = scmp.lt.s32.totalorder %s25, 1
      %s376 = scalar_select %p375, %s25, 1
      %p377 = scmp.lt.s32.totalorder %s374, 15
      %s378 = scalar_select %p377, %s374, 15
      %s379 = smul.addr %s378, 2
      %s380 = smul.addr %s376, 32
      %s381 = sadd.s32 %s379, %s380
      %s382 = smul.addr %s381, 8
      %s383 = scalar_lea.vmem %s10, %s382
      %s384 = smul.u32 8, %s26
      %s385 = smul.u32 %s26, 8
      %s386 = smul.u32 %s385, 24
      %s387 = scalar_lea.vmem %s373, %s386
      %v388 = vld [vmem:[%s387] sm:$0xff]
      %v389 = vld [vmem:[%s387 + $0x8] sm:$0xff]
      %v390 = vld [vmem:[%s387 + $0x10] sm:$0xff]
      %v391 = vld [vmem:[%s387 + $0x18] sm:$0xff]
      %v392 = vld [vmem:[%s387 + $0x20] sm:$0xff]
      %v393 = vld [vmem:[%s387 + $0x28] sm:$0xff]
      %v394 = vld [vmem:[%s387 + $0x30] sm:$0xff]
      %v395 = vld [vmem:[%s387 + $0x38] sm:$0xff]
      %v396 = vld [vmem:[%s387 + $0x40] sm:$0xff]
      %v397 = vld [vmem:[%s387 + $0x48] sm:$0xff]
      %v398 = vld [vmem:[%s387 + $0x50] sm:$0xff]
      %v399 = vld [vmem:[%s387 + $0x58] sm:$0xff]
      %v400 = vld [vmem:[%s387 + $0x60] sm:$0xff]
      %v401 = vld [vmem:[%s387 + $0x68] sm:$0xff]
      %v402 = vld [vmem:[%s387 + $0x70] sm:$0xff]
      %v403 = vld [vmem:[%s387 + $0x78] sm:$0xff]
      %v404 = vld [vmem:[%s387 + $0x80] sm:$0xff]
      %v405 = vld [vmem:[%s387 + $0x88] sm:$0xff]
      %v406 = vld [vmem:[%s387 + $0x90] sm:$0xff]
      %v407 = vld [vmem:[%s387 + $0x98] sm:$0xff]
      %v408 = vld [vmem:[%s387 + $0xa0] sm:$0xff]
      %v409 = vld [vmem:[%s387 + $0xa8] sm:$0xff]
      %v410 = vld [vmem:[%s387 + $0xb0] sm:$0xff]
      %v411 = vld [vmem:[%s387 + $0xb8] sm:$0xff]
      %v412 = vld [vmem:[%s387 + $0xc0] sm:$0xff]
      %v413 = vld [vmem:[%s387 + $0xc8] sm:$0xff]
      %v414 = vld [vmem:[%s387 + $0xd0] sm:$0xff]
      %v415 = vld [vmem:[%s387 + $0xd8] sm:$0xff]
      %v416 = vld [vmem:[%s387 + $0xe0] sm:$0xff]
      %v417 = vld [vmem:[%s387 + $0xe8] sm:$0xff]
      %v418 = vld [vmem:[%s1] sm:$0xf]
      %vm419 = vcmask 31744
      %v421 = vsel %vm419, %v388, 0
      %v424 = vsel %vm419, %v389, 0
      %v427 = vsel %vm419, %v390, 0
      %v430 = vsel %vm419, %v391, 0
      %v433 = vsel %vm419, %v392, 0
      %v436 = vsel %vm419, %v393, 0
      %v439 = vsel %vm419, %v394, 0
      %v442 = vsel %vm419, %v395, 0
      %v445 = vsel %vm419, %v396, 0
      %v448 = vsel %vm419, %v397, 0
      %v451 = vsel %vm419, %v398, 0
      %v454 = vsel %vm419, %v399, 0
      %v457 = vsel %vm419, %v400, 0
      %v460 = vsel %vm419, %v401, 0
      %v463 = vsel %vm419, %v402, 0
      %v466 = vsel %vm419, %v403, 0
      %v469 = vsel %vm419, %v404, 0
      %v472 = vsel %vm419, %v405, 0
      %v475 = vsel %vm419, %v406, 0
      %v478 = vsel %vm419, %v407, 0
      %v481 = vsel %vm419, %v408, 0
      %v484 = vsel %vm419, %v409, 0
      %v487 = vsel %vm419, %v410, 0
      %v490 = vsel %vm419, %v411, 0
      %v493 = vsel %vm419, %v412, 0
      %v496 = vsel %vm419, %v413, 0
      %v499 = vsel %vm419, %v414, 0
      %v502 = vsel %vm419, %v415, 0
      %v505 = vsel %vm419, %v416, 0
      %v508 = vsel %vm419, %v417, 0
      %vm510 = vcmask 1043456
      %v512 = vsel %vm510, %v418, 0
      %514 = vmatpush.msra.mxu0 0.0
      %515 = vmatpush.msra.mxu0 0.0
      %516 = vmatpush.msra.mxu0 0.0
      %517 = vmatpush.msra.mxu0 0.0
      %518 = vmatpush.msra.mxu0 0.0
      %519 = vmatpush.msra.mxu0 0.0
      %520 = vmatpush.msra.mxu0 0.0
      %521 = vmatpush.msra.mxu0 0.0
      %522 = vmatpush.msra.mxu0 0.0
      %523 = vmatpush.msra.mxu0 0.0
      %524 = vmatpush.msra.mxu0 0.0
      %525 = vmatpush.msra.mxu0 0.0
      %526 = vmatpush.msra.mxu0 0.0
      %527 = vmatpush.msra.mxu0 0.0
      %528 = vmatpush.msra.mxu0 0.0
      %529 = vmatpush.msra.mxu0 %v512
      %530 = vmatmul.f32.gmra.mxu0 %v421
      %v531 = vpop.f32.mrf.mxu0
      %v532 = vadd.f32 0.0, %v531
      %533 = vmatmul.f32.gmra.mxu0 %v424
      %v534 = vpop.f32.mrf.mxu0
      %v535 = vadd.f32 0.0, %v534
      %536 = vmatmul.f32.gmra.mxu0 %v427
      %v537 = vpop.f32.mrf.mxu0
      %v538 = vadd.f32 0.0, %v537
      %539 = vmatmul.f32.gmra.mxu0 %v430
      %v540 = vpop.f32.mrf.mxu0
      %v541 = vadd.f32 0.0, %v540
      %542 = vmatmul.f32.gmra.mxu0 %v433
      %v543 = vpop.f32.mrf.mxu0
      %v544 = vadd.f32 0.0, %v543
      %545 = vmatmul.f32.gmra.mxu0 %v436
      %v546 = vpop.f32.mrf.mxu0
      %v547 = vadd.f32 0.0, %v546
      %548 = vmatmul.f32.gmra.mxu0 %v439
      %v549 = vpop.f32.mrf.mxu0
      %v550 = vadd.f32 0.0, %v549
      %551 = vmatmul.f32.gmra.mxu0 %v442
      %v552 = vpop.f32.mrf.mxu0
      %v553 = vadd.f32 0.0, %v552
      %554 = vmatmul.f32.gmra.mxu0 %v445
      %v555 = vpop.f32.mrf.mxu0
      %v556 = vadd.f32 0.0, %v555
      %557 = vmatmul.f32.gmra.mxu0 %v448
      %v558 = vpop.f32.mrf.mxu0
      %v559 = vadd.f32 0.0, %v558
      %560 = vmatmul.f32.gmra.mxu0 %v451
      %v561 = vpop.f32.mrf.mxu0
      %v562 = vadd.f32 0.0, %v561
      %563 = vmatmul.f32.gmra.mxu0 %v454
      %v564 = vpop.f32.mrf.mxu0
      %v565 = vadd.f32 0.0, %v564
      %566 = vmatmul.f32.gmra.mxu0 %v457
      %v567 = vpop.f32.mrf.mxu0
      %v568 = vadd.f32 0.0, %v567
      %569 = vmatmul.f32.gmra.mxu0 %v460
      %v570 = vpop.f32.mrf.mxu0
      %v571 = vadd.f32 0.0, %v570
      %572 = vmatmul.f32.gmra.mxu0 %v463
      %v573 = vpop.f32.mrf.mxu0
      %v574 = vadd.f32 0.0, %v573
      %575 = vmatmul.f32.gmra.mxu0 %v466
      %v576 = vpop.f32.mrf.mxu0
      %v577 = vadd.f32 0.0, %v576
      %578 = vmatmul.f32.gmra.mxu0 %v469
      %v579 = vpop.f32.mrf.mxu0
      %v580 = vadd.f32 0.0, %v579
      %581 = vmatmul.f32.gmra.mxu0 %v472
      %v582 = vpop.f32.mrf.mxu0
      %v583 = vadd.f32 0.0, %v582
      %584 = vmatmul.f32.gmra.mxu0 %v475
      %v585 = vpop.f32.mrf.mxu0
      %v586 = vadd.f32 0.0, %v585
      %587 = vmatmul.f32.gmra.mxu0 %v478
      %v588 = vpop.f32.mrf.mxu0
      %v589 = vadd.f32 0.0, %v588
      %590 = vmatmul.f32.gmra.mxu0 %v481
      %v591 = vpop.f32.mrf.mxu0
      %v592 = vadd.f32 0.0, %v591
      %593 = vmatmul.f32.gmra.mxu0 %v484
      %v594 = vpop.f32.mrf.mxu0
      %v595 = vadd.f32 0.0, %v594
      %596 = vmatmul.f32.gmra.mxu0 %v487
      %v597 = vpop.f32.mrf.mxu0
      %v598 = vadd.f32 0.0, %v597
      %599 = vmatmul.f32.gmra.mxu0 %v490
      %v600 = vpop.f32.mrf.mxu0
      %v601 = vadd.f32 0.0, %v600
      %602 = vmatmul.f32.gmra.mxu0 %v493
      %v603 = vpop.f32.mrf.mxu0
      %v604 = vadd.f32 0.0, %v603
      %605 = vmatmul.f32.gmra.mxu0 %v496
      %v606 = vpop.f32.mrf.mxu0
      %v607 = vadd.f32 0.0, %v606
      %608 = vmatmul.f32.gmra.mxu0 %v499
      %v609 = vpop.f32.mrf.mxu0
      %v610 = vadd.f32 0.0, %v609
      %611 = vmatmul.f32.gmra.mxu0 %v502
      %v612 = vpop.f32.mrf.mxu0
      %v613 = vadd.f32 0.0, %v612
      %614 = vmatmul.f32.gmra.mxu0 %v505
      %v615 = vpop.f32.mrf.mxu0
      %v616 = vadd.f32 0.0, %v615
      %617 = vmatmul.f32.gmra.mxu0 %v508
      %v618 = vpop.f32.mrf.mxu0
      %v619 = vadd.f32 0.0, %v618
      %620 = vdwg.mxu0
      %v621 = vld [vmem:[%s2] sm:$0x1]
      %v623 = vperm.slane %v621, 0
      %v625 = vmul.f32 %v532, %v623
      %v626 = vmul.f32 %v535, %v623
      %v627 = vmul.f32 %v538, %v623
      %v628 = vmul.f32 %v541, %v623
      %v629 = vmul.f32 %v544, %v623
      %v630 = vmul.f32 %v547, %v623
      %v631 = vmul.f32 %v550, %v623
      %v632 = vmul.f32 %v553, %v623
      %v633 = vmul.f32 %v556, %v623
      %v634 = vmul.f32 %v559, %v623
      %v635 = vmul.f32 %v562, %v623
      %v636 = vmul.f32 %v565, %v623
      %v637 = vmul.f32 %v568, %v623
      %v638 = vmul.f32 %v571, %v623
      %v639 = vmul.f32 %v574, %v623
      %v640 = vmul.f32 %v577, %v623
      %v641 = vmul.f32 %v580, %v623
      %v642 = vmul.f32 %v583, %v623
      %v643 = vmul.f32 %v586, %v623
      %v644 = vmul.f32 %v589, %v623
      %v645 = vmul.f32 %v592, %v623
      %v646 = vmul.f32 %v595, %v623
      %v647 = vmul.f32 %v598, %v623
      %v648 = vmul.f32 %v601, %v623
      %v649 = vmul.f32 %v604, %v623
      %v650 = vmul.f32 %v607, %v623
      %v651 = vmul.f32 %v610, %v623
      %v652 = vmul.f32 %v613, %v623
      %v653 = vmul.f32 %v616, %v623
      %v654 = vmul.f32 %v619, %v623
      %v655 = vld [vmem:[%s3] sm:$0x1]
      %v657 = vperm.slane %v655, 0
      %v659 = vadd.f32 %v625, %v657
      %v660 = vadd.f32 %v626, %v657
      %v661 = vadd.f32 %v627, %v657
      %v662 = vadd.f32 %v628, %v657
      %v663 = vadd.f32 %v629, %v657
      %v664 = vadd.f32 %v630, %v657
      %v665 = vadd.f32 %v631, %v657
      %v666 = vadd.f32 %v632, %v657
      %v667 = vadd.f32 %v633, %v657
      %v668 = vadd.f32 %v634, %v657
      %v669 = vadd.f32 %v635, %v657
      %v670 = vadd.f32 %v636, %v657
      %v671 = vadd.f32 %v637, %v657
      %v672 = vadd.f32 %v638, %v657
      %v673 = vadd.f32 %v639, %v657
      %v674 = vadd.f32 %v640, %v657
      %v675 = vadd.f32 %v641, %v657
      %v676 = vadd.f32 %v642, %v657
      %v677 = vadd.f32 %v643, %v657
      %v678 = vadd.f32 %v644, %v657
      %v679 = vadd.f32 %v645, %v657
      %v680 = vadd.f32 %v646, %v657
      %v681 = vadd.f32 %v647, %v657
      %v682 = vadd.f32 %v648, %v657
      %v683 = vadd.f32 %v649, %v657
      %v684 = vadd.f32 %v650, %v657
      %v685 = vadd.f32 %v651, %v657
      %v686 = vadd.f32 %v652, %v657
      %v687 = vadd.f32 %v653, %v657
      %v688 = vadd.f32 %v654, %v657
      %v689 = vmax.f32 %v659, 0.0
      %v690 = vmax.f32 %v660, 0.0
      %v691 = vmax.f32 %v661, 0.0
      %v692 = vmax.f32 %v662, 0.0
      %v693 = vmax.f32 %v663, 0.0
      %v694 = vmax.f32 %v664, 0.0
      %v695 = vmax.f32 %v665, 0.0
      %v696 = vmax.f32 %v666, 0.0
      %v697 = vmax.f32 %v667, 0.0
      %v698 = vmax.f32 %v668, 0.0
      %v699 = vmax.f32 %v669, 0.0
      %v700 = vmax.f32 %v670, 0.0
      %v701 = vmax.f32 %v671, 0.0
      %v702 = vmax.f32 %v672, 0.0
      %v703 = vmax.f32 %v673, 0.0
      %v704 = vmax.f32 %v674, 0.0
      %v705 = vmax.f32 %v675, 0.0
      %v706 = vmax.f32 %v676, 0.0
      %v707 = vmax.f32 %v677, 0.0
      %v708 = vmax.f32 %v678, 0.0
      %v709 = vmax.f32 %v679, 0.0
      %v710 = vmax.f32 %v680, 0.0
      %v711 = vmax.f32 %v681, 0.0
      %v712 = vmax.f32 %v682, 0.0
      %v713 = vmax.f32 %v683, 0.0
      %v714 = vmax.f32 %v684, 0.0
      %v715 = vmax.f32 %v685, 0.0
      %v716 = vmax.f32 %v686, 0.0
      %v717 = vmax.f32 %v687, 0.0
      %v718 = vmax.f32 %v688, 0.0
      %v719 = vmin.f32 %v689, 6.0
      %v720 = vmin.f32 %v690, 6.0
      %v721 = vmin.f32 %v691, 6.0
      %v722 = vmin.f32 %v692, 6.0
      %v723 = vmin.f32 %v693, 6.0
      %v724 = vmin.f32 %v694, 6.0
      %v725 = vmin.f32 %v695, 6.0
      %v726 = vmin.f32 %v696, 6.0
      %v727 = vmin.f32 %v697, 6.0
      %v728 = vmin.f32 %v698, 6.0
      %v729 = vmin.f32 %v699, 6.0
      %v730 = vmin.f32 %v700, 6.0
      %v731 = vmin.f32 %v701, 6.0
      %v732 = vmin.f32 %v702, 6.0
      %v733 = vmin.f32 %v703, 6.0
      %v734 = vmin.f32 %v704, 6.0
      %v735 = vmin.f32 %v705, 6.0
      %v736 = vmin.f32 %v706, 6.0
      %v737 = vmin.f32 %v707, 6.0
      %v738 = vmin.f32 %v708, 6.0
      %v739 = vmin.f32 %v709, 6.0
      %v740 = vmin.f32 %v710, 6.0
      %v741 = vmin.f32 %v711, 6.0
      %v742 = vmin.f32 %v712, 6.0
      %v743 = vmin.f32 %v713, 6.0
      %v744 = vmin.f32 %v714, 6.0
      %v745 = vmin.f32 %v715, 6.0
      %v746 = vmin.f32 %v716, 6.0
      %v747 = vmin.f32 %v717, 6.0
      %v748 = vmin.f32 %v718, 6.0
      %v749 = vstv %s385
      %v750 = vadd.s32 %v749, 1
      %v751 = vadd.s32 %v749, 2
      %v752 = vadd.s32 %v749, 3
      %v753 = vadd.s32 %v749, 4
      %v754 = vadd.s32 %v749, 5
      %v755 = vadd.s32 %v749, 6
      %v756 = vadd.s32 %v749, 7
      %v757 = vadd.s32 %v749, 8
      %v758 = vadd.s32 %v749, 9
      %v759 = vlaneseq
      %v760 = vshrl.u32 %v759, 7
      %v761 = vadd.s32 %v760, 8
      %v762 = vadd.s32 %v760, 16
      %vm763 = vcmp.ge.s32.totalorder %v749, 1
      %vm764 = vcmp.ge.s32.totalorder %v750, 1
      %vm765 = vcmp.ge.s32.totalorder %v751, 1
      %vm766 = vcmp.ge.s32.totalorder %v752, 1
      %vm767 = vcmp.ge.s32.totalorder %v753, 1
      %vm768 = vcmp.ge.s32.totalorder %v754, 1
      %vm769 = vcmp.ge.s32.totalorder %v755, 1
      %vm770 = vcmp.ge.s32.totalorder %v756, 1
      %vm771 = vcmp.ge.s32.totalorder %v757, 1
      %vm772 = vcmp.ge.s32.totalorder %v758, 1
      %vm773 = vcmp.le.s32.totalorder %v749, 16
      %vm774 = vcmp.le.s32.totalorder %v750, 16
      %vm775 = vcmp.le.s32.totalorder %v751, 16
      %vm776 = vcmp.le.s32.totalorder %v752, 16
      %vm777 = vcmp.le.s32.totalorder %v753, 16
      %vm778 = vcmp.le.s32.totalorder %v754, 16
      %vm779 = vcmp.le.s32.totalorder %v755, 16
      %vm780 = vcmp.le.s32.totalorder %v756, 16
      %vm781 = vcmp.le.s32.totalorder %v757, 16
      %vm782 = vcmp.le.s32.totalorder %v758, 16
      %vm783 = vmand %vm763, %vm773
      %vm784 = vmand %vm764, %vm774
      %vm785 = vmand %vm765, %vm775
      %vm786 = vmand %vm766, %vm776
      %vm787 = vmand %vm767, %vm777
      %vm788 = vmand %vm768, %vm778
      %vm789 = vmand %vm769, %vm779
      %vm790 = vmand %vm770, %vm780
      %vm791 = vmand %vm771, %vm781
      %vm792 = vmand %vm772, %vm782
      %vm793 = vcmp.ge.s32.totalorder %v760, 1
      %vm794 = vcmp.ge.s32.totalorder %v761, 1
      %vm795 = vcmp.ge.s32.totalorder %v762, 1
      %vm796 = vmand %vm783, %vm793
      %vm797 = vmand %vm783, %vm794
      %vm798 = vmand %vm783, %vm795
      %vm799 = vmand %vm784, %vm793
      %vm800 = vmand %vm784, %vm794
      %vm801 = vmand %vm784, %vm795
      %vm802 = vmand %vm785, %vm793
      %vm803 = vmand %vm785, %vm794
      %vm804 = vmand %vm785, %vm795
      %vm805 = vmand %vm786, %vm793
      %vm806 = vmand %vm786, %vm794
      %vm807 = vmand %vm786, %vm795
      %vm808 = vmand %vm787, %vm793
      %vm809 = vmand %vm787, %vm794
      %vm810 = vmand %vm787, %vm795
      %vm811 = vmand %vm788, %vm793
      %vm812 = vmand %vm788, %vm794
      %vm813 = vmand %vm788, %vm795
      %vm814 = vmand %vm789, %vm793
      %vm815 = vmand %vm789, %vm794
      %vm816 = vmand %vm789, %vm795
      %vm817 = vmand %vm790, %vm793
      %vm818 = vmand %vm790, %vm794
      %vm819 = vmand %vm790, %vm795
      %vm820 = vmand %vm791, %vm793
      %vm821 = vmand %vm791, %vm794
      %vm822 = vmand %vm791, %vm795
      %vm823 = vmand %vm792, %vm793
      %vm824 = vmand %vm792, %vm794
      %vm825 = vmand %vm792, %vm795
      %vm826 = vcmp.le.s32.totalorder %v760, 16
      %vm827 = vcmp.le.s32.totalorder %v761, 16
      %vm828 = vcmp.le.s32.totalorder %v762, 16
      %vm829 = vmand %vm796, %vm826
      %vm830 = vmand %vm797, %vm827
      %vm831 = vmand %vm798, %vm828
      %vm832 = vmand %vm799, %vm826
      %vm833 = vmand %vm800, %vm827
      %vm834 = vmand %vm801, %vm828
      %vm835 = vmand %vm802, %vm826
      %vm836 = vmand %vm803, %vm827
      %vm837 = vmand %vm804, %vm828
      %vm838 = vmand %vm805, %vm826
      %vm839 = vmand %vm806, %vm827
      %vm840 = vmand %vm807, %vm828
      %vm841 = vmand %vm808, %vm826
      %vm842 = vmand %vm809, %vm827
      %vm843 = vmand %vm810, %vm828
      %vm844 = vmand %vm811, %vm826
      %vm845 = vmand %vm812, %vm827
      %vm846 = vmand %vm813, %vm828
      %vm847 = vmand %vm814, %vm826
      %vm848 = vmand %vm815, %vm827
      %vm849 = vmand %vm816, %vm828
      %vm850 = vmand %vm817, %vm826
      %vm851 = vmand %vm818, %vm827
      %vm852 = vmand %vm819, %vm828
      %vm853 = vmand %vm820, %vm826
      %vm854 = vmand %vm821, %vm827
      %vm855 = vmand %vm822, %vm828
      %vm856 = vmand %vm823, %vm826
      %vm857 = vmand %vm824, %vm827
      %vm858 = vmand %vm825, %vm828
      %v859 = vsel %vm829, 1, 0
      %v860 = vsel %vm830, 1, 0
      %v861 = vsel %vm831, 1, 0
      %v862 = vsel %vm832, 1, 0
      %v863 = vsel %vm833, 1, 0
      %v864 = vsel %vm834, 1, 0
      %v865 = vsel %vm835, 1, 0
      %v866 = vsel %vm836, 1, 0
      %v867 = vsel %vm837, 1, 0
      %v868 = vsel %vm838, 1, 0
      %v869 = vsel %vm839, 1, 0
      %v870 = vsel %vm840, 1, 0
      %v871 = vsel %vm841, 1, 0
      %v872 = vsel %vm842, 1, 0
      %v873 = vsel %vm843, 1, 0
      %v874 = vsel %vm844, 1, 0
      %v875 = vsel %vm845, 1, 0
      %v876 = vsel %vm846, 1, 0
      %v877 = vsel %vm847, 1, 0
      %v878 = vsel %vm848, 1, 0
      %v879 = vsel %vm849, 1, 0
      %v880 = vsel %vm850, 1, 0
      %v881 = vsel %vm851, 1, 0
      %v882 = vsel %vm852, 1, 0
      %v883 = vsel %vm853, 1, 0
      %v884 = vsel %vm854, 1, 0
      %v885 = vsel %vm855, 1, 0
      %v886 = vsel %vm856, 1, 0
      %v887 = vsel %vm857, 1, 0
      %v888 = vsel %vm858, 1, 0
      %vm889 = vcmp.eq.s32.totalorder %v859, 1
      %vm890 = vcmp.eq.s32.totalorder %v860, 1
      %vm891 = vcmp.eq.s32.totalorder %v861, 1
      %vm892 = vcmp.eq.s32.totalorder %v862, 1
      %vm893 = vcmp.eq.s32.totalorder %v863, 1
      %vm894 = vcmp.eq.s32.totalorder %v864, 1
      %vm895 = vcmp.eq.s32.totalorder %v865, 1
      %vm896 = vcmp.eq.s32.totalorder %v866, 1
      %vm897 = vcmp.eq.s32.totalorder %v867, 1
      %vm898 = vcmp.eq.s32.totalorder %v868, 1
      %vm899 = vcmp.eq.s32.totalorder %v869, 1
      %vm900 = vcmp.eq.s32.totalorder %v870, 1
      %vm901 = vcmp.eq.s32.totalorder %v871, 1
      %vm902 = vcmp.eq.s32.totalorder %v872, 1
      %vm903 = vcmp.eq.s32.totalorder %v873, 1
      %vm904 = vcmp.eq.s32.totalorder %v874, 1
      %vm905 = vcmp.eq.s32.totalorder %v875, 1
      %vm906 = vcmp.eq.s32.totalorder %v876, 1
      %vm907 = vcmp.eq.s32.totalorder %v877, 1
      %vm908 = vcmp.eq.s32.totalorder %v878, 1
      %vm909 = vcmp.eq.s32.totalorder %v879, 1
      %vm910 = vcmp.eq.s32.totalorder %v880, 1
      %vm911 = vcmp.eq.s32.totalorder %v881, 1
      %vm912 = vcmp.eq.s32.totalorder %v882, 1
      %vm913 = vcmp.eq.s32.totalorder %v883, 1
      %vm914 = vcmp.eq.s32.totalorder %v884, 1
      %vm915 = vcmp.eq.s32.totalorder %v885, 1
      %vm916 = vcmp.eq.s32.totalorder %v886, 1
      %vm917 = vcmp.eq.s32.totalorder %v887, 1
      %vm918 = vcmp.eq.s32.totalorder %v888, 1
      %v919 = vsel %vm889, %v719, 0.0
      %v920 = vsel %vm890, %v720, 0.0
      %v921 = vsel %vm891, %v721, 0.0
      %v922 = vsel %vm892, %v722, 0.0
      %v923 = vsel %vm893, %v723, 0.0
      %v924 = vsel %vm894, %v724, 0.0
      %v925 = vsel %vm895, %v725, 0.0
      %v926 = vsel %vm896, %v726, 0.0
      %v927 = vsel %vm897, %v727, 0.0
      %v928 = vsel %vm898, %v728, 0.0
      %v929 = vsel %vm899, %v729, 0.0
      %v930 = vsel %vm900, %v730, 0.0
      %v931 = vsel %vm901, %v731, 0.0
      %v932 = vsel %vm902, %v732, 0.0
      %v933 = vsel %vm903, %v733, 0.0
      %v934 = vsel %vm904, %v734, 0.0
      %v935 = vsel %vm905, %v735, 0.0
      %v936 = vsel %vm906, %v736, 0.0
      %v937 = vsel %vm907, %v737, 0.0
      %v938 = vsel %vm908, %v738, 0.0
      %v939 = vsel %vm909, %v739, 0.0
      %v940 = vsel %vm910, %v740, 0.0
      %v941 = vsel %vm911, %v741, 0.0
      %v942 = vsel %vm912, %v742, 0.0
      %v943 = vsel %vm913, %v743, 0.0
      %v944 = vsel %vm914, %v744, 0.0
      %v945 = vsel %vm915, %v745, 0.0
      %v946 = vsel %vm916, %v746, 0.0
      %v947 = vsel %vm917, %v747, 0.0
      %v948 = vsel %vm918, %v748, 0.0
      %vm949 = vcmask 195584
      %950 = vst.msk [vmem:[#allocation2] sm:$0xff] %vm949, %v919
      %951 = vst.msk [vmem:[#allocation2 + $0x8] sm:$0xff] %vm949, %v920
      %952 = vst.msk [vmem:[#allocation2 + $0x10] sm:$0xff] %vm949, %v921
      %953 = vst.msk [vmem:[#allocation2 + $0x18] sm:$0xff] %vm949, %v922
      %954 = vst.msk [vmem:[#allocation2 + $0x20] sm:$0xff] %vm949, %v923
      %955 = vst.msk [vmem:[#allocation2 + $0x28] sm:$0xff] %vm949, %v924
      %956 = vst.msk [vmem:[#allocation2 + $0x30] sm:$0xff] %vm949, %v925
      %957 = vst.msk [vmem:[#allocation2 + $0x38] sm:$0xff] %vm949, %v926
      %958 = vst.msk [vmem:[#allocation2 + $0x40] sm:$0xff] %vm949, %v927
      %959 = vst.msk [vmem:[#allocation2 + $0x48] sm:$0xff] %vm949, %v928
      %960 = vst.msk [vmem:[#allocation2 + $0x50] sm:$0xff] %vm949, %v929
      %961 = vst.msk [vmem:[#allocation2 + $0x58] sm:$0xff] %vm949, %v930
      %962 = vst.msk [vmem:[#allocation2 + $0x60] sm:$0xff] %vm949, %v931
      %963 = vst.msk [vmem:[#allocation2 + $0x68] sm:$0xff] %vm949, %v932
      %964 = vst.msk [vmem:[#allocation2 + $0x70] sm:$0xff] %vm949, %v933
      %965 = vst.msk [vmem:[#allocation2 + $0x78] sm:$0xff] %vm949, %v934
      %966 = vst.msk [vmem:[#allocation2 + $0x80] sm:$0xff] %vm949, %v935
      %967 = vst.msk [vmem:[#allocation2 + $0x88] sm:$0xff] %vm949, %v936
      %968 = vst.msk [vmem:[#allocation2 + $0x90] sm:$0xff] %vm949, %v937
      %969 = vst.msk [vmem:[#allocation2 + $0x98] sm:$0xff] %vm949, %v938
      %970 = vst.msk [vmem:[#allocation2 + $0xa0] sm:$0xff] %vm949, %v939
      %971 = vst.msk [vmem:[#allocation2 + $0xa8] sm:$0xff] %vm949, %v940
      %972 = vst.msk [vmem:[#allocation2 + $0xb0] sm:$0xff] %vm949, %v941
      %973 = vst.msk [vmem:[#allocation2 + $0xb8] sm:$0xff] %vm949, %v942
      %974 = vst.msk [vmem:[#allocation2 + $0xc0] sm:$0xff] %vm949, %v943
      %975 = vst.msk [vmem:[#allocation2 + $0xc8] sm:$0xff] %vm949, %v944
      %976 = vst.msk [vmem:[#allocation2 + $0xd0] sm:$0xff] %vm949, %v945
      %977 = vst.msk [vmem:[#allocation2 + $0xd8] sm:$0xff] %vm949, %v946
      %978 = vst.msk [vmem:[#allocation2 + $0xe0] sm:$0xff] %vm949, %v947
      %979 = vst.msk [vmem:[#allocation2 + $0xe8] sm:$0xff] %vm949, %v948
      %v980 = vld [vmem:[#allocation2] sm:$0xff]
      %v981 = vld [vmem:[#allocation2 + $0x8] sm:$0xff]
      %v982 = vld [vmem:[#allocation2 + $0x18] sm:$0xff]
      %v983 = vld [vmem:[#allocation2 + $0x20] sm:$0xff]
      %v984 = vld [vmem:[#allocation2 + $0x30] sm:$0xff]
      %v985 = vld [vmem:[#allocation2 + $0x38] sm:$0xff]
      %v986 = vld [vmem:[#allocation2 + $0x48] sm:$0xff]
      %v987 = vld [vmem:[#allocation2 + $0x50] sm:$0xff]
      %v988 = vld [vmem:[#allocation2 + $0x60] sm:$0xff]
      %v989 = vld [vmem:[#allocation2 + $0x68] sm:$0xff]
      %v990 = vld [vmem:[#allocation2 + $0x78] sm:$0xff]
      %v991 = vld [vmem:[#allocation2 + $0x80] sm:$0xff]
      %v992 = vld [vmem:[#allocation2 + $0x90] sm:$0xff]
      %v993 = vld [vmem:[#allocation2 + $0x98] sm:$0xff]
      %v994 = vld [vmem:[#allocation2 + $0xa8] sm:$0xff]
      %v995 = vld [vmem:[#allocation2 + $0xb0] sm:$0xff]
      %v996 = vld [vmem:[%s4] sm:$0x1]
      %v997 = vperm.slane %v996, 0
      %v998 = vmul.f32 %v980, %v997
      %v999 = vmul.f32 %v981, %v997
      %v1000 = vmul.f32 %v982, %v997
      %v1001 = vmul.f32 %v983, %v997
      %v1002 = vmul.f32 %v984, %v997
      %v1003 = vmul.f32 %v985, %v997
      %v1004 = vmul.f32 %v986, %v997
      %v1005 = vmul.f32 %v987, %v997
      %v1006 = vmul.f32 %v988, %v997
      %v1007 = vmul.f32 %v989, %v997
      %v1008 = vmul.f32 %v990, %v997
      %v1009 = vmul.f32 %v991, %v997
      %v1010 = vmul.f32 %v992, %v997
      %v1011 = vmul.f32 %v993, %v997
      %v1012 = vmul.f32 %v994, %v997
      %v1013 = vmul.f32 %v995, %v997
      %v1014 = vadd.f32 %v998, 0.0
      %v1015 = vadd.f32 %v999, 0.0
      %v1016 = vadd.f32 %v1000, 0.0
      %v1017 = vadd.f32 %v1001, 0.0
      %v1018 = vadd.f32 %v1002, 0.0
      %v1019 = vadd.f32 %v1003, 0.0
      %v1020 = vadd.f32 %v1004, 0.0
      %v1021 = vadd.f32 %v1005, 0.0
      %v1022 = vadd.f32 %v1006, 0.0
      %v1023 = vadd.f32 %v1007, 0.0
      %v1024 = vadd.f32 %v1008, 0.0
      %v1025 = vadd.f32 %v1009, 0.0
      %v1026 = vadd.f32 %v1010, 0.0
      %v1027 = vadd.f32 %v1011, 0.0
      %v1028 = vadd.f32 %v1012, 0.0
      %v1029 = vadd.f32 %v1013, 0.0
      %v1030 = vld [vmem:[#allocation2 + $0x1] sm:$0xff]
      %v1031 = vld [vmem:[#allocation2 + $0x9] sm:$0xff]
      %v1032 = vld [vmem:[#allocation2 + $0x19] sm:$0xff]
      %v1033 = vld [vmem:[#allocation2 + $0x21] sm:$0xff]
      %v1034 = vld [vmem:[#allocation2 + $0x31] sm:$0xff]
      %v1035 = vld [vmem:[#allocation2 + $0x39] sm:$0xff]
      %v1036 = vld [vmem:[#allocation2 + $0x49] sm:$0xff]
      %v1037 = vld [vmem:[#allocation2 + $0x51] sm:$0xff]
      %v1038 = vld [vmem:[#allocation2 + $0x61] sm:$0xff]
      %v1039 = vld [vmem:[#allocation2 + $0x69] sm:$0xff]
      %v1040 = vld [vmem:[#allocation2 + $0x79] sm:$0xff]
      %v1041 = vld [vmem:[#allocation2 + $0x81] sm:$0xff]
      %v1042 = vld [vmem:[#allocation2 + $0x91] sm:$0xff]
      %v1043 = vld [vmem:[#allocation2 + $0x99] sm:$0xff]
      %v1044 = vld [vmem:[#allocation2 + $0xa9] sm:$0xff]
      %v1045 = vld [vmem:[#allocation2 + $0xb1] sm:$0xff]
      %v1046 = vld [vmem:[%s4 + $0x1] sm:$0x1]
      %v1047 = vperm.slane %v1046, 0
      %v1048 = vmul.f32 %v1030, %v1047
      %v1049 = vmul.f32 %v1031, %v1047
      %v1050 = vmul.f32 %v1032, %v1047
      %v1051 = vmul.f32 %v1033, %v1047
      %v1052 = vmul.f32 %v1034, %v1047
      %v1053 = vmul.f32 %v1035, %v1047
      %v1054 = vmul.f32 %v1036, %v1047
      %v1055 = vmul.f32 %v1037, %v1047
      %v1056 = vmul.f32 %v1038, %v1047
      %v1057 = vmul.f32 %v1039, %v1047
      %v1058 = vmul.f32 %v1040, %v1047
      %v1059 = vmul.f32 %v1041, %v1047
      %v1060 = vmul.f32 %v1042, %v1047
      %v1061 = vmul.f32 %v1043, %v1047
      %v1062 = vmul.f32 %v1044, %v1047
      %v1063 = vmul.f32 %v1045, %v1047
      %v1064 = vadd.f32 %v1014, %v1048
      %v1065 = vadd.f32 %v1015, %v1049
      %v1066 = vadd.f32 %v1016, %v1050
      %v1067 = vadd.f32 %v1017, %v1051
      %v1068 = vadd.f32 %v1018, %v1052
      %v1069 = vadd.f32 %v1019, %v1053
      %v1070 = vadd.f32 %v1020, %v1054
      %v1071 = vadd.f32 %v1021, %v1055
      %v1072 = vadd.f32 %v1022, %v1056
      %v1073 = vadd.f32 %v1023, %v1057
      %v1074 = vadd.f32 %v1024, %v1058
      %v1075 = vadd.f32 %v1025, %v1059
      %v1076 = vadd.f32 %v1026, %v1060
      %v1077 = vadd.f32 %v1027, %v1061
      %v1078 = vadd.f32 %v1028, %v1062
      %v1079 = vadd.f32 %v1029, %v1063
      %v1080 = vld [vmem:[#allocation2 + $0x2] sm:$0xff]
      %v1081 = vld [vmem:[#allocation2 + $0xa] sm:$0xff]
      %v1082 = vld [vmem:[#allocation2 + $0x1a] sm:$0xff]
      %v1083 = vld [vmem:[#allocation2 + $0x22] sm:$0xff]
      %v1084 = vld [vmem:[#allocation2 + $0x32] sm:$0xff]
      %v1085 = vld [vmem:[#allocation2 + $0x3a] sm:$0xff]
      %v1086 = vld [vmem:[#allocation2 + $0x4a] sm:$0xff]
      %v1087 = vld [vmem:[#allocation2 + $0x52] sm:$0xff]
      %v1088 = vld [vmem:[#allocation2 + $0x62] sm:$0xff]
      %v1089 = vld [vmem:[#allocation2 + $0x6a] sm:$0xff]
      %v1090 = vld [vmem:[#allocation2 + $0x7a] sm:$0xff]
      %v1091 = vld [vmem:[#allocation2 + $0x82] sm:$0xff]
      %v1092 = vld [vmem:[#allocation2 + $0x92] sm:$0xff]
      %v1093 = vld [vmem:[#allocation2 + $0x9a] sm:$0xff]
      %v1094 = vld [vmem:[#allocation2 + $0xaa] sm:$0xff]
      %v1095 = vld [vmem:[#allocation2 + $0xb2] sm:$0xff]
      %v1096 = vld [vmem:[%s4 + $0x2] sm:$0x1]
      %v1097 = vperm.slane %v1096, 0
      %v1098 = vmul.f32 %v1080, %v1097
      %v1099 = vmul.f32 %v1081, %v1097
      %v1100 = vmul.f32 %v1082, %v1097
      %v1101 = vmul.f32 %v1083, %v1097
      %v1102 = vmul.f32 %v1084, %v1097
      %v1103 = vmul.f32 %v1085, %v1097
      %v1104 = vmul.f32 %v1086, %v1097
      %v1105 = vmul.f32 %v1087, %v1097
      %v1106 = vmul.f32 %v1088, %v1097
      %v1107 = vmul.f32 %v1089, %v1097
      %v1108 = vmul.f32 %v1090, %v1097
      %v1109 = vmul.f32 %v1091, %v1097
      %v1110 = vmul.f32 %v1092, %v1097
      %v1111 = vmul.f32 %v1093, %v1097
      %v1112 = vmul.f32 %v1094, %v1097
      %v1113 = vmul.f32 %v1095, %v1097
      %v1114 = vadd.f32 %v1064, %v1098
      %v1115 = vadd.f32 %v1065, %v1099
      %v1116 = vadd.f32 %v1066, %v1100
      %v1117 = vadd.f32 %v1067, %v1101
      %v1118 = vadd.f32 %v1068, %v1102
      %v1119 = vadd.f32 %v1069, %v1103
      %v1120 = vadd.f32 %v1070, %v1104
      %v1121 = vadd.f32 %v1071, %v1105
      %v1122 = vadd.f32 %v1072, %v1106
      %v1123 = vadd.f32 %v1073, %v1107
      %v1124 = vadd.f32 %v1074, %v1108
      %v1125 = vadd.f32 %v1075, %v1109
      %v1126 = vadd.f32 %v1076, %v1110
      %v1127 = vadd.f32 %v1077, %v1111
      %v1128 = vadd.f32 %v1078, %v1112
      %v1129 = vadd.f32 %v1079, %v1113
      %s1130 = scalar_lea.vmem [#allocation2], 24
      %v1131 = vld [vmem:[%s1130] sm:$0xff]
      %v1132 = vld [vmem:[%s1130 + $0x8] sm:$0xff]
      %v1133 = vld [vmem:[%s1130 + $0x18] sm:$0xff]
      %v1134 = vld [vmem:[%s1130 + $0x20] sm:$0xff]
      %v1135 = vld [vmem:[%s1130 + $0x30] sm:$0xff]
      %v1136 = vld [vmem:[%s1130 + $0x38] sm:$0xff]
      %v1137 = vld [vmem:[%s1130 + $0x48] sm:$0xff]
      %v1138 = vld [vmem:[%s1130 + $0x50] sm:$0xff]
      %v1139 = vld [vmem:[%s1130 + $0x60] sm:$0xff]
      %v1140 = vld [vmem:[%s1130 + $0x68] sm:$0xff]
      %v1141 = vld [vmem:[%s1130 + $0x78] sm:$0xff]
      %v1142 = vld [vmem:[%s1130 + $0x80] sm:$0xff]
      %v1143 = vld [vmem:[%s1130 + $0x90] sm:$0xff]
      %v1144 = vld [vmem:[%s1130 + $0x98] sm:$0xff]
      %v1145 = vld [vmem:[%s1130 + $0xa8] sm:$0xff]
      %v1146 = vld [vmem:[%s1130 + $0xb0] sm:$0xff]
      %s1147 = scalar_lea.vmem %s4, 4
      %v1148 = vld [vmem:[%s1147] sm:$0x1]
      %v1149 = vperm.slane %v1148, 0
      %v1150 = vmul.f32 %v1131, %v1149
      %v1151 = vmul.f32 %v1132, %v1149
      %v1152 = vmul.f32 %v1133, %v1149
      %v1153 = vmul.f32 %v1134, %v1149
      %v1154 = vmul.f32 %v1135, %v1149
      %v1155 = vmul.f32 %v1136, %v1149
      %v1156 = vmul.f32 %v1137, %v1149
      %v1157 = vmul.f32 %v1138, %v1149
      %v1158 = vmul.f32 %v1139, %v1149
      %v1159 = vmul.f32 %v1140, %v1149
      %v1160 = vmul.f32 %v1141, %v1149
      %v1161 = vmul.f32 %v1142, %v1149
      %v1162 = vmul.f32 %v1143, %v1149
      %v1163 = vmul.f32 %v1144, %v1149
      %v1164 = vmul.f32 %v1145, %v1149
      %v1165 = vmul.f32 %v1146, %v1149
      %v1166 = vadd.f32 %v1114, %v1150
      %v1167 = vadd.f32 %v1115, %v1151
      %v1168 = vadd.f32 %v1116, %v1152
      %v1169 = vadd.f32 %v1117, %v1153
      %v1170 = vadd.f32 %v1118, %v1154
      %v1171 = vadd.f32 %v1119, %v1155
      %v1172 = vadd.f32 %v1120, %v1156
      %v1173 = vadd.f32 %v1121, %v1157
      %v1174 = vadd.f32 %v1122, %v1158
      %v1175 = vadd.f32 %v1123, %v1159
      %v1176 = vadd.f32 %v1124, %v1160
      %v1177 = vadd.f32 %v1125, %v1161
      %v1178 = vadd.f32 %v1126, %v1162
      %v1179 = vadd.f32 %v1127, %v1163
      %v1180 = vadd.f32 %v1128, %v1164
      %v1181 = vadd.f32 %v1129, %v1165
      %v1182 = vld [vmem:[%s1130 + $0x1] sm:$0xff]
      %v1183 = vld [vmem:[%s1130 + $0x9] sm:$0xff]
      %v1184 = vld [vmem:[%s1130 + $0x19] sm:$0xff]
      %v1185 = vld [vmem:[%s1130 + $0x21] sm:$0xff]
      %v1186 = vld [vmem:[%s1130 + $0x31] sm:$0xff]
      %v1187 = vld [vmem:[%s1130 + $0x39] sm:$0xff]
      %v1188 = vld [vmem:[%s1130 + $0x49] sm:$0xff]
      %v1189 = vld [vmem:[%s1130 + $0x51] sm:$0xff]
      %v1190 = vld [vmem:[%s1130 + $0x61] sm:$0xff]
      %v1191 = vld [vmem:[%s1130 + $0x69] sm:$0xff]
      %v1192 = vld [vmem:[%s1130 + $0x79] sm:$0xff]
      %v1193 = vld [vmem:[%s1130 + $0x81] sm:$0xff]
      %v1194 = vld [vmem:[%s1130 + $0x91] sm:$0xff]
      %v1195 = vld [vmem:[%s1130 + $0x99] sm:$0xff]
      %v1196 = vld [vmem:[%s1130 + $0xa9] sm:$0xff]
      %v1197 = vld [vmem:[%s1130 + $0xb1] sm:$0xff]
      %v1198 = vld [vmem:[%s1147 + $0x1] sm:$0x1]
      %v1199 = vperm.slane %v1198, 0
      %v1200 = vmul.f32 %v1182, %v1199
      %v1201 = vmul.f32 %v1183, %v1199
      %v1202 = vmul.f32 %v1184, %v1199
      %v1203 = vmul.f32 %v1185, %v1199
      %v1204 = vmul.f32 %v1186, %v1199
      %v1205 = vmul.f32 %v1187, %v1199
      %v1206 = vmul.f32 %v1188, %v1199
      %v1207 = vmul.f32 %v1189, %v1199
      %v1208 = vmul.f32 %v1190, %v1199
      %v1209 = vmul.f32 %v1191, %v1199
      %v1210 = vmul.f32 %v1192, %v1199
      %v1211 = vmul.f32 %v1193, %v1199
      %v1212 = vmul.f32 %v1194, %v1199
      %v1213 = vmul.f32 %v1195, %v1199
      %v1214 = vmul.f32 %v1196, %v1199
      %v1215 = vmul.f32 %v1197, %v1199
      %v1216 = vadd.f32 %v1166, %v1200
      %v1217 = vadd.f32 %v1167, %v1201
      %v1218 = vadd.f32 %v1168, %v1202
      %v1219 = vadd.f32 %v1169, %v1203
      %v1220 = vadd.f32 %v1170, %v1204
      %v1221 = vadd.f32 %v1171, %v1205
      %v1222 = vadd.f32 %v1172, %v1206
      %v1223 = vadd.f32 %v1173, %v1207
      %v1224 = vadd.f32 %v1174, %v1208
      %v1225 = vadd.f32 %v1175, %v1209
      %v1226 = vadd.f32 %v1176, %v1210
      %v1227 = vadd.f32 %v1177, %v1211
      %v1228 = vadd.f32 %v1178, %v1212
      %v1229 = vadd.f32 %v1179, %v1213
      %v1230 = vadd.f32 %v1180, %v1214
      %v1231 = vadd.f32 %v1181, %v1215
      %v1232 = vld [vmem:[%s1130 + $0x2] sm:$0xff]
      %v1233 = vld [vmem:[%s1130 + $0xa] sm:$0xff]
      %v1234 = vld [vmem:[%s1130 + $0x1a] sm:$0xff]
      %v1235 = vld [vmem:[%s1130 + $0x22] sm:$0xff]
      %v1236 = vld [vmem:[%s1130 + $0x32] sm:$0xff]
      %v1237 = vld [vmem:[%s1130 + $0x3a] sm:$0xff]
      %v1238 = vld [vmem:[%s1130 + $0x4a] sm:$0xff]
      %v1239 = vld [vmem:[%s1130 + $0x52] sm:$0xff]
      %v1240 = vld [vmem:[%s1130 + $0x62] sm:$0xff]
      %v1241 = vld [vmem:[%s1130 + $0x6a] sm:$0xff]
      %v1242 = vld [vmem:[%s1130 + $0x7a] sm:$0xff]
      %v1243 = vld [vmem:[%s1130 + $0x82] sm:$0xff]
      %v1244 = vld [vmem:[%s1130 + $0x92] sm:$0xff]
      %v1245 = vld [vmem:[%s1130 + $0x9a] sm:$0xff]
      %v1246 = vld [vmem:[%s1130 + $0xaa] sm:$0xff]
      %v1247 = vld [vmem:[%s1130 + $0xb2] sm:$0xff]
      %v1248 = vld [vmem:[%s1147 + $0x2] sm:$0x1]
      %v1249 = vperm.slane %v1248, 0
      %v1250 = vmul.f32 %v1232, %v1249
      %v1251 = vmul.f32 %v1233, %v1249
      %v1252 = vmul.f32 %v1234, %v1249
      %v1253 = vmul.f32 %v1235, %v1249
      %v1254 = vmul.f32 %v1236, %v1249
      %v1255 = vmul.f32 %v1237, %v1249
      %v1256 = vmul.f32 %v1238, %v1249
      %v1257 = vmul.f32 %v1239, %v1249
      %v1258 = vmul.f32 %v1240, %v1249
      %v1259 = vmul.f32 %v1241, %v1249
      %v1260 = vmul.f32 %v1242, %v1249
      %v1261 = vmul.f32 %v1243, %v1249
      %v1262 = vmul.f32 %v1244, %v1249
      %v1263 = vmul.f32 %v1245, %v1249
      %v1264 = vmul.f32 %v1246, %v1249
      %v1265 = vmul.f32 %v1247, %v1249
      %v1266 = vadd.f32 %v1216, %v1250
      %v1267 = vadd.f32 %v1217, %v1251
      %v1268 = vadd.f32 %v1218, %v1252
      %v1269 = vadd.f32 %v1219, %v1253
      %v1270 = vadd.f32 %v1220, %v1254
      %v1271 = vadd.f32 %v1221, %v1255
      %v1272 = vadd.f32 %v1222, %v1256
      %v1273 = vadd.f32 %v1223, %v1257
      %v1274 = vadd.f32 %v1224, %v1258
      %v1275 = vadd.f32 %v1225, %v1259
      %v1276 = vadd.f32 %v1226, %v1260
      %v1277 = vadd.f32 %v1227, %v1261
      %v1278 = vadd.f32 %v1228, %v1262
      %v1279 = vadd.f32 %v1229, %v1263
      %v1280 = vadd.f32 %v1230, %v1264
      %v1281 = vadd.f32 %v1231, %v1265
      %s1282 = scalar_lea.vmem [#allocation2], 48
      %v1283 = vld [vmem:[%s1282] sm:$0xff]
      %v1284 = vld [vmem:[%s1282 + $0x8] sm:$0xff]
      %v1285 = vld [vmem:[%s1282 + $0x18] sm:$0xff]
      %v1286 = vld [vmem:[%s1282 + $0x20] sm:$0xff]
      %v1287 = vld [vmem:[%s1282 + $0x30] sm:$0xff]
      %v1288 = vld [vmem:[%s1282 + $0x38] sm:$0xff]
      %v1289 = vld [vmem:[%s1282 + $0x48] sm:$0xff]
      %v1290 = vld [vmem:[%s1282 + $0x50] sm:$0xff]
      %v1291 = vld [vmem:[%s1282 + $0x60] sm:$0xff]
      %v1292 = vld [vmem:[%s1282 + $0x68] sm:$0xff]
      %v1293 = vld [vmem:[%s1282 + $0x78] sm:$0xff]
      %v1294 = vld [vmem:[%s1282 + $0x80] sm:$0xff]
      %v1295 = vld [vmem:[%s1282 + $0x90] sm:$0xff]
      %v1296 = vld [vmem:[%s1282 + $0x98] sm:$0xff]
      %v1297 = vld [vmem:[%s1282 + $0xa8] sm:$0xff]
      %v1298 = vld [vmem:[%s1282 + $0xb0] sm:$0xff]
      %s1299 = scalar_lea.vmem %s4, 8
      %v1300 = vld [vmem:[%s1299] sm:$0x1]
      %v1301 = vperm.slane %v1300, 0
      %v1302 = vmul.f32 %v1283, %v1301
      %v1303 = vmul.f32 %v1284, %v1301
      %v1304 = vmul.f32 %v1285, %v1301
      %v1305 = vmul.f32 %v1286, %v1301
      %v1306 = vmul.f32 %v1287, %v1301
      %v1307 = vmul.f32 %v1288, %v1301
      %v1308 = vmul.f32 %v1289, %v1301
      %v1309 = vmul.f32 %v1290, %v1301
      %v1310 = vmul.f32 %v1291, %v1301
      %v1311 = vmul.f32 %v1292, %v1301
      %v1312 = vmul.f32 %v1293, %v1301
      %v1313 = vmul.f32 %v1294, %v1301
      %v1314 = vmul.f32 %v1295, %v1301
      %v1315 = vmul.f32 %v1296, %v1301
      %v1316 = vmul.f32 %v1297, %v1301
      %v1317 = vmul.f32 %v1298, %v1301
      %v1318 = vadd.f32 %v1266, %v1302
      %v1319 = vadd.f32 %v1267, %v1303
      %v1320 = vadd.f32 %v1268, %v1304
      %v1321 = vadd.f32 %v1269, %v1305
      %v1322 = vadd.f32 %v1270, %v1306
      %v1323 = vadd.f32 %v1271, %v1307
      %v1324 = vadd.f32 %v1272, %v1308
      %v1325 = vadd.f32 %v1273, %v1309
      %v1326 = vadd.f32 %v1274, %v1310
      %v1327 = vadd.f32 %v1275, %v1311
      %v1328 = vadd.f32 %v1276, %v1312
      %v1329 = vadd.f32 %v1277, %v1313
      %v1330 = vadd.f32 %v1278, %v1314
      %v1331 = vadd.f32 %v1279, %v1315
      %v1332 = vadd.f32 %v1280, %v1316
      %v1333 = vadd.f32 %v1281, %v1317
      %v1334 = vld [vmem:[%s1282 + $0x1] sm:$0xff]
      %v1335 = vld [vmem:[%s1282 + $0x9] sm:$0xff]
      %v1336 = vld [vmem:[%s1282 + $0x19] sm:$0xff]
      %v1337 = vld [vmem:[%s1282 + $0x21] sm:$0xff]
      %v1338 = vld [vmem:[%s1282 + $0x31] sm:$0xff]
      %v1339 = vld [vmem:[%s1282 + $0x39] sm:$0xff]
      %v1340 = vld [vmem:[%s1282 + $0x49] sm:$0xff]
      %v1341 = vld [vmem:[%s1282 + $0x51] sm:$0xff]
      %v1342 = vld [vmem:[%s1282 + $0x61] sm:$0xff]
      %v1343 = vld [vmem:[%s1282 + $0x69] sm:$0xff]
      %v1344 = vld [vmem:[%s1282 + $0x79] sm:$0xff]
      %v1345 = vld [vmem:[%s1282 + $0x81] sm:$0xff]
      %v1346 = vld [vmem:[%s1282 + $0x91] sm:$0xff]
      %v1347 = vld [vmem:[%s1282 + $0x99] sm:$0xff]
      %v1348 = vld [vmem:[%s1282 + $0xa9] sm:$0xff]
      %v1349 = vld [vmem:[%s1282 + $0xb1] sm:$0xff]
      %v1350 = vld [vmem:[%s1299 + $0x1] sm:$0x1]
      %v1351 = vperm.slane %v1350, 0
      %v1352 = vmul.f32 %v1334, %v1351
      %v1353 = vmul.f32 %v1335, %v1351
      %v1354 = vmul.f32 %v1336, %v1351
      %v1355 = vmul.f32 %v1337, %v1351
      %v1356 = vmul.f32 %v1338, %v1351
      %v1357 = vmul.f32 %v1339, %v1351
      %v1358 = vmul.f32 %v1340, %v1351
      %v1359 = vmul.f32 %v1341, %v1351
      %v1360 = vmul.f32 %v1342, %v1351
      %v1361 = vmul.f32 %v1343, %v1351
      %v1362 = vmul.f32 %v1344, %v1351
      %v1363 = vmul.f32 %v1345, %v1351
      %v1364 = vmul.f32 %v1346, %v1351
      %v1365 = vmul.f32 %v1347, %v1351
      %v1366 = vmul.f32 %v1348, %v1351
      %v1367 = vmul.f32 %v1349, %v1351
      %v1368 = vadd.f32 %v1318, %v1352
      %v1369 = vadd.f32 %v1319, %v1353
      %v1370 = vadd.f32 %v1320, %v1354
      %v1371 = vadd.f32 %v1321, %v1355
      %v1372 = vadd.f32 %v1322, %v1356
      %v1373 = vadd.f32 %v1323, %v1357
      %v1374 = vadd.f32 %v1324, %v1358
      %v1375 = vadd.f32 %v1325, %v1359
      %v1376 = vadd.f32 %v1326, %v1360
      %v1377 = vadd.f32 %v1327, %v1361
      %v1378 = vadd.f32 %v1328, %v1362
      %v1379 = vadd.f32 %v1329, %v1363
      %v1380 = vadd.f32 %v1330, %v1364
      %v1381 = vadd.f32 %v1331, %v1365
      %v1382 = vadd.f32 %v1332, %v1366
      %v1383 = vadd.f32 %v1333, %v1367
      %v1384 = vld [vmem:[%s1282 + $0x2] sm:$0xff]
      %v1385 = vld [vmem:[%s1282 + $0xa] sm:$0xff]
      %v1386 = vld [vmem:[%s1282 + $0x1a] sm:$0xff]
      %v1387 = vld [vmem:[%s1282 + $0x22] sm:$0xff]
      %v1388 = vld [vmem:[%s1282 + $0x32] sm:$0xff]
      %v1389 = vld [vmem:[%s1282 + $0x3a] sm:$0xff]
      %v1390 = vld [vmem:[%s1282 + $0x4a] sm:$0xff]
      %v1391 = vld [vmem:[%s1282 + $0x52] sm:$0xff]
      %v1392 = vld [vmem:[%s1282 + $0x62] sm:$0xff]
      %v1393 = vld [vmem:[%s1282 + $0x6a] sm:$0xff]
      %v1394 = vld [vmem:[%s1282 + $0x7a] sm:$0xff]
      %v1395 = vld [vmem:[%s1282 + $0x82] sm:$0xff]
      %v1396 = vld [vmem:[%s1282 + $0x92] sm:$0xff]
      %v1397 = vld [vmem:[%s1282 + $0x9a] sm:$0xff]
      %v1398 = vld [vmem:[%s1282 + $0xaa] sm:$0xff]
      %v1399 = vld [vmem:[%s1282 + $0xb2] sm:$0xff]
      %v1400 = vld [vmem:[%s1299 + $0x2] sm:$0x1]
      %v1401 = vperm.slane %v1400, 0
      %v1402 = vmul.f32 %v1384, %v1401
      %v1403 = vmul.f32 %v1385, %v1401
      %v1404 = vmul.f32 %v1386, %v1401
      %v1405 = vmul.f32 %v1387, %v1401
      %v1406 = vmul.f32 %v1388, %v1401
      %v1407 = vmul.f32 %v1389, %v1401
      %v1408 = vmul.f32 %v1390, %v1401
      %v1409 = vmul.f32 %v1391, %v1401
      %v1410 = vmul.f32 %v1392, %v1401
      %v1411 = vmul.f32 %v1393, %v1401
      %v1412 = vmul.f32 %v1394, %v1401
      %v1413 = vmul.f32 %v1395, %v1401
      %v1414 = vmul.f32 %v1396, %v1401
      %v1415 = vmul.f32 %v1397, %v1401
      %v1416 = vmul.f32 %v1398, %v1401
      %v1417 = vmul.f32 %v1399, %v1401
      %v1418 = vadd.f32 %v1368, %v1402
      %v1419 = vadd.f32 %v1369, %v1403
      %v1420 = vadd.f32 %v1370, %v1404
      %v1421 = vadd.f32 %v1371, %v1405
      %v1422 = vadd.f32 %v1372, %v1406
      %v1423 = vadd.f32 %v1373, %v1407
      %v1424 = vadd.f32 %v1374, %v1408
      %v1425 = vadd.f32 %v1375, %v1409
      %v1426 = vadd.f32 %v1376, %v1410
      %v1427 = vadd.f32 %v1377, %v1411
      %v1428 = vadd.f32 %v1378, %v1412
      %v1429 = vadd.f32 %v1379, %v1413
      %v1430 = vadd.f32 %v1380, %v1414
      %v1431 = vadd.f32 %v1381, %v1415
      %v1432 = vadd.f32 %v1382, %v1416
      %v1433 = vadd.f32 %v1383, %v1417
      %v1434 = vld [vmem:[%s5] sm:$0x1]
      %v1436 = vperm.slane %v1434, 0
      %v1438 = vmul.f32 %v1418, %v1436
      %v1439 = vmul.f32 %v1419, %v1436
      %v1440 = vmul.f32 %v1420, %v1436
      %v1441 = vmul.f32 %v1421, %v1436
      %v1442 = vmul.f32 %v1422, %v1436
      %v1443 = vmul.f32 %v1423, %v1436
      %v1444 = vmul.f32 %v1424, %v1436
      %v1445 = vmul.f32 %v1425, %v1436
      %v1446 = vmul.f32 %v1426, %v1436
      %v1447 = vmul.f32 %v1427, %v1436
      %v1448 = vmul.f32 %v1428, %v1436
      %v1449 = vmul.f32 %v1429, %v1436
      %v1450 = vmul.f32 %v1430, %v1436
      %v1451 = vmul.f32 %v1431, %v1436
      %v1452 = vmul.f32 %v1432, %v1436
      %v1453 = vmul.f32 %v1433, %v1436
      %v1454 = vld [vmem:[%s6] sm:$0x1]
      %v1456 = vperm.slane %v1454, 0
      %v1458 = vadd.f32 %v1438, %v1456
      %v1459 = vadd.f32 %v1439, %v1456
      %v1460 = vadd.f32 %v1440, %v1456
      %v1461 = vadd.f32 %v1441, %v1456
      %v1462 = vadd.f32 %v1442, %v1456
      %v1463 = vadd.f32 %v1443, %v1456
      %v1464 = vadd.f32 %v1444, %v1456
      %v1465 = vadd.f32 %v1445, %v1456
      %v1466 = vadd.f32 %v1446, %v1456
      %v1467 = vadd.f32 %v1447, %v1456
      %v1468 = vadd.f32 %v1448, %v1456
      %v1469 = vadd.f32 %v1449, %v1456
      %v1470 = vadd.f32 %v1450, %v1456
      %v1471 = vadd.f32 %v1451, %v1456
      %v1472 = vadd.f32 %v1452, %v1456
      %v1473 = vadd.f32 %v1453, %v1456
      %v1474 = vmax.f32 %v1458, 0.0
      %v1475 = vmax.f32 %v1459, 0.0
      %v1476 = vmax.f32 %v1460, 0.0
      %v1477 = vmax.f32 %v1461, 0.0
      %v1478 = vmax.f32 %v1462, 0.0
      %v1479 = vmax.f32 %v1463, 0.0
      %v1480 = vmax.f32 %v1464, 0.0
      %v1481 = vmax.f32 %v1465, 0.0
      %v1482 = vmax.f32 %v1466, 0.0
      %v1483 = vmax.f32 %v1467, 0.0
      %v1484 = vmax.f32 %v1468, 0.0
      %v1485 = vmax.f32 %v1469, 0.0
      %v1486 = vmax.f32 %v1470, 0.0
      %v1487 = vmax.f32 %v1471, 0.0
      %v1488 = vmax.f32 %v1472, 0.0
      %v1489 = vmax.f32 %v1473, 0.0
      %v1490 = vmin.f32 %v1474, 6.0
      %v1491 = vmin.f32 %v1475, 6.0
      %v1492 = vmin.f32 %v1476, 6.0
      %v1493 = vmin.f32 %v1477, 6.0
      %v1494 = vmin.f32 %v1478, 6.0
      %v1495 = vmin.f32 %v1479, 6.0
      %v1496 = vmin.f32 %v1480, 6.0
      %v1497 = vmin.f32 %v1481, 6.0
      %v1498 = vmin.f32 %v1482, 6.0
      %v1499 = vmin.f32 %v1483, 6.0
      %v1500 = vmin.f32 %v1484, 6.0
      %v1501 = vmin.f32 %v1485, 6.0
      %v1502 = vmin.f32 %v1486, 6.0
      %v1503 = vmin.f32 %v1487, 6.0
      %v1504 = vmin.f32 %v1488, 6.0
      %v1505 = vmin.f32 %v1489, 6.0
      %v1506 = vld [vmem:[%s7] sm:$0xff]
      %v1507 = vld [vmem:[%s7 + $0x8] sm:$0xff]
      %v1508 = vld [vmem:[%s7 + $0x10] sm:$0xff]
      %v1510 = vsel %vm949, %v1490, 0
      %v1513 = vsel %vm949, %v1491, 0
      %v1516 = vsel %vm949, %v1492, 0
      %v1519 = vsel %vm949, %v1493, 0
      %v1522 = vsel %vm949, %v1494, 0
      %v1525 = vsel %vm949, %v1495, 0
      %v1528 = vsel %vm949, %v1496, 0
      %v1531 = vsel %vm949, %v1497, 0
      %v1534 = vsel %vm949, %v1498, 0
      %v1537 = vsel %vm949, %v1499, 0
      %v1540 = vsel %vm949, %v1500, 0
      %v1543 = vsel %vm949, %v1501, 0
      %v1546 = vsel %vm949, %v1502, 0
      %v1549 = vsel %vm949, %v1503, 0
      %v1552 = vsel %vm949, %v1504, 0
      %v1555 = vsel %vm949, %v1505, 0
      %1557 = vmatpush.msra.mxu0 0.0
      %1558 = vmatpush.msra.mxu0 0.0
      %1559 = vmatpush.msra.mxu0 0.0
      %1560 = vmatpush.msra.mxu0 0.0
      %1561 = vmatpush.msra.mxu0 0.0
      %1562 = vmatpush.msra.mxu0 0.0
      %1563 = vmatpush.msra.mxu0 0.0
      %1564 = vmatpush.msra.mxu0 0.0
      %1565 = vmatpush.msra.mxu0 0.0
      %1566 = vmatpush.msra.mxu0 0.0
      %1567 = vmatpush.msra.mxu0 0.0
      %1568 = vmatpush.msra.mxu0 0.0
      %1569 = vmatpush.msra.mxu0 0.0
      %1570 = vmatpush.msra.mxu0 %v1508
      %1571 = vmatpush.msra.mxu0 %v1507
      %1572 = vmatpush.msra.mxu0 %v1506
      %1573 = vmatmul.f32.gmra.mxu0 %v1510
      %v1574 = vpop.f32.mrf.mxu0
      %v1575 = vadd.f32 0.0, %v1574
      %1576 = vmatmul.f32.gmra.mxu0 %v1513
      %v1577 = vpop.f32.mrf.mxu0
      %v1578 = vadd.f32 0.0, %v1577
      %1579 = vmatmul.f32.gmra.mxu0 %v1516
      %v1580 = vpop.f32.mrf.mxu0
      %v1581 = vadd.f32 0.0, %v1580
      %1582 = vmatmul.f32.gmra.mxu0 %v1519
      %v1583 = vpop.f32.mrf.mxu0
      %v1584 = vadd.f32 0.0, %v1583
      %1585 = vmatmul.f32.gmra.mxu0 %v1522
      %v1586 = vpop.f32.mrf.mxu0
      %v1587 = vadd.f32 0.0, %v1586
      %1588 = vmatmul.f32.gmra.mxu0 %v1525
      %v1589 = vpop.f32.mrf.mxu0
      %v1590 = vadd.f32 0.0, %v1589
      %1591 = vmatmul.f32.gmra.mxu0 %v1528
      %v1592 = vpop.f32.mrf.mxu0
      %v1593 = vadd.f32 0.0, %v1592
      %1594 = vmatmul.f32.gmra.mxu0 %v1531
      %v1595 = vpop.f32.mrf.mxu0
      %v1596 = vadd.f32 0.0, %v1595
      %1597 = vmatmul.f32.gmra.mxu0 %v1534
      %v1598 = vpop.f32.mrf.mxu0
      %v1599 = vadd.f32 0.0, %v1598
      %1600 = vmatmul.f32.gmra.mxu0 %v1537
      %v1601 = vpop.f32.mrf.mxu0
      %v1602 = vadd.f32 0.0, %v1601
      %1603 = vmatmul.f32.gmra.mxu0 %v1540
      %v1604 = vpop.f32.mrf.mxu0
      %v1605 = vadd.f32 0.0, %v1604
      %1606 = vmatmul.f32.gmra.mxu0 %v1543
      %v1607 = vpop.f32.mrf.mxu0
      %v1608 = vadd.f32 0.0, %v1607
      %1609 = vmatmul.f32.gmra.mxu0 %v1546
      %v1610 = vpop.f32.mrf.mxu0
      %v1611 = vadd.f32 0.0, %v1610
      %1612 = vmatmul.f32.gmra.mxu0 %v1549
      %v1613 = vpop.f32.mrf.mxu0
      %v1614 = vadd.f32 0.0, %v1613
      %1615 = vmatmul.f32.gmra.mxu0 %v1552
      %v1616 = vpop.f32.mrf.mxu0
      %v1617 = vadd.f32 0.0, %v1616
      %1618 = vmatmul.f32.gmra.mxu0 %v1555
      %v1619 = vpop.f32.mrf.mxu0
      %v1620 = vadd.f32 0.0, %v1619
      %1621 = vdwg.mxu0
      %v1622 = vld [vmem:[%s8] sm:$0x1]
      %v1624 = vperm.slane %v1622, 0
      %v1626 = vmul.f32 %v1575, %v1624
      %v1627 = vmul.f32 %v1578, %v1624
      %v1628 = vmul.f32 %v1581, %v1624
      %v1629 = vmul.f32 %v1584, %v1624
      %v1630 = vmul.f32 %v1587, %v1624
      %v1631 = vmul.f32 %v1590, %v1624
      %v1632 = vmul.f32 %v1593, %v1624
      %v1633 = vmul.f32 %v1596, %v1624
      %v1634 = vmul.f32 %v1599, %v1624
      %v1635 = vmul.f32 %v1602, %v1624
      %v1636 = vmul.f32 %v1605, %v1624
      %v1637 = vmul.f32 %v1608, %v1624
      %v1638 = vmul.f32 %v1611, %v1624
      %v1639 = vmul.f32 %v1614, %v1624
      %v1640 = vmul.f32 %v1617, %v1624
      %v1641 = vmul.f32 %v1620, %v1624
      %v1642 = vld [vmem:[%s9] sm:$0x1]
      %v1644 = vperm.slane %v1642, 0
      %v1646 = vadd.f32 %v1626, %v1644
      %v1647 = vadd.f32 %v1627, %v1644
      %v1648 = vadd.f32 %v1628, %v1644
      %v1649 = vadd.f32 %v1629, %v1644
      %v1650 = vadd.f32 %v1630, %v1644
      %v1651 = vadd.f32 %v1631, %v1644
      %v1652 = vadd.f32 %v1632, %v1644
      %v1653 = vadd.f32 %v1633, %v1644
      %v1654 = vadd.f32 %v1634, %v1644
      %v1655 = vadd.f32 %v1635, %v1644
      %v1656 = vadd.f32 %v1636, %v1644
      %v1657 = vadd.f32 %v1637, %v1644
      %v1658 = vadd.f32 %v1638, %v1644
      %v1659 = vadd.f32 %v1639, %v1644
      %v1660 = vadd.f32 %v1640, %v1644
      %v1661 = vadd.f32 %v1641, %v1644
      %s1662 = sadd.s32 %s385, 1
      %s1663 = smul.u32 %s1662, 24
      %s1664 = scalar_lea.vmem %s373, %s1663
      %v1665 = vld [vmem:[%s1664 + $0x1] sm:$0xff]
      %v1666 = vld [vmem:[%s1664 + $0x9] sm:$0xff]
      %v1667 = vld [vmem:[%s1664 + $0x19] sm:$0xff]
      %v1668 = vld [vmem:[%s1664 + $0x21] sm:$0xff]
      %v1669 = vld [vmem:[%s1664 + $0x31] sm:$0xff]
      %v1670 = vld [vmem:[%s1664 + $0x39] sm:$0xff]
      %v1671 = vld [vmem:[%s1664 + $0x49] sm:$0xff]
      %v1672 = vld [vmem:[%s1664 + $0x51] sm:$0xff]
      %v1673 = vld [vmem:[%s1664 + $0x61] sm:$0xff]
      %v1674 = vld [vmem:[%s1664 + $0x69] sm:$0xff]
      %v1675 = vld [vmem:[%s1664 + $0x79] sm:$0xff]
      %v1676 = vld [vmem:[%s1664 + $0x81] sm:$0xff]
      %v1677 = vld [vmem:[%s1664 + $0x91] sm:$0xff]
      %v1678 = vld [vmem:[%s1664 + $0x99] sm:$0xff]
      %v1679 = vld [vmem:[%s1664 + $0xa9] sm:$0xff]
      %v1680 = vld [vmem:[%s1664 + $0xb1] sm:$0xff]
      %v1681 = vadd.f32 %v1646, %v1665
      %v1682 = vadd.f32 %v1647, %v1666
      %v1683 = vadd.f32 %v1648, %v1667
      %v1684 = vadd.f32 %v1649, %v1668
      %v1685 = vadd.f32 %v1650, %v1669
      %v1686 = vadd.f32 %v1651, %v1670
      %v1687 = vadd.f32 %v1652, %v1671
      %v1688 = vadd.f32 %v1653, %v1672
      %v1689 = vadd.f32 %v1654, %v1673
      %v1690 = vadd.f32 %v1655, %v1674
      %v1691 = vadd.f32 %v1656, %v1675
      %v1692 = vadd.f32 %v1657, %v1676
      %v1693 = vadd.f32 %v1658, %v1677
      %v1694 = vadd.f32 %v1659, %v1678
      %v1695 = vadd.f32 %v1660, %v1679
      %v1696 = vadd.f32 %v1661, %v1680
      %1697 = vst.msk [vmem:[%s383] sm:$0xff] %vm419, %v1681
      %1698 = vst.msk [vmem:[%s383 + $0x8] sm:$0xff] %vm419, %v1682
      %1699 = vst.msk [vmem:[%s383 + $0x10] sm:$0xff] %vm419, %v1683
      %1700 = vst.msk [vmem:[%s383 + $0x18] sm:$0xff] %vm419, %v1684
      %1701 = vst.msk [vmem:[%s383 + $0x20] sm:$0xff] %vm419, %v1685
      %1702 = vst.msk [vmem:[%s383 + $0x28] sm:$0xff] %vm419, %v1686
      %1703 = vst.msk [vmem:[%s383 + $0x30] sm:$0xff] %vm419, %v1687
      %1704 = vst.msk [vmem:[%s383 + $0x38] sm:$0xff] %vm419, %v1688
      %1705 = vst.msk [vmem:[%s383 + $0x40] sm:$0xff] %vm419, %v1689
      %1706 = vst.msk [vmem:[%s383 + $0x48] sm:$0xff] %vm419, %v1690
      %1707 = vst.msk [vmem:[%s383 + $0x50] sm:$0xff] %vm419, %v1691
      %1708 = vst.msk [vmem:[%s383 + $0x58] sm:$0xff] %vm419, %v1692
      %1709 = vst.msk [vmem:[%s383 + $0x60] sm:$0xff] %vm419, %v1693
      %1710 = vst.msk [vmem:[%s383 + $0x68] sm:$0xff] %vm419, %v1694
      %1711 = vst.msk [vmem:[%s383 + $0x70] sm:$0xff] %vm419, %v1695
      %1712 = vst.msk [vmem:[%s383 + $0x78] sm:$0xff] %vm419, %v1696
      %s1713 = smul.u32 8, %s26
      %p1714 = scmp.lt.s32.totalorder %s25, 1
      %s1715 = scalar_select %p1714, %s25, 1
      %p1716 = scmp.lt.s32.totalorder %s1713, 15
      %s1717 = scalar_select %p1716, %s1713, 15
      %s1718 = smul.addr %s1717, 2
      %s1719 = smul.addr %s1715, 32
      %s1720 = sadd.s32 %s1718, %s1719
      %s1721 = smul.addr %s1720, 8
      %s1722 = scalar_lea.vmem %s10, %s1721
      // Predicated region
      $region61: #{tpu_custom_call.1} parent=59 // pred_check
        %p1723 = pneg %p268
      $region62: #{tpu_custom_call.1} parent=59 // pred_check_branch
        %1725 = sbr.rel (%p1723) target = $region64
      $region63: #{tpu_custom_call.1} parent=59 // pred_region
        %s1726 = smul.u32 8, %s26
      $region64: #{tpu_custom_call.1} parent=59 // pred_fallthru
        _
    $region60: #{tpu_custom_call.1} parent=5 // pred_fallthru
      _
    %p1727 = scmp.le.s32.totalorder 2, %s16
    // Predicated region
    $region65: #{tpu_custom_call.1} parent=5 // pred_check
      %p1728 = pneg %p1727
    $region66: #{tpu_custom_call.1} parent=5 // pred_check_branch
      %1730 = sbr.rel (%p1728) target = $region68
    $region67: #{tpu_custom_call.1} parent=5 // pred_region
      %s1731 = ssub.s32 %s16, 2
      // Predicated region
      $region69: #{tpu_custom_call.1} parent=67 // pred_check
        %p1732 = pneg %p274
      $region70: #{tpu_custom_call.1} parent=67 // pred_check_branch
        %1734 = sbr.rel (%p1732) target = $region72
      $region71: #{tpu_custom_call.1} parent=67 // pred_region
        %s1735 = smul.u32 8, %s28
        %p1736 = scmp.lt.s32.totalorder %s27, 1
        %s1737 = scalar_select %p1736, %s27, 1
        %p1738 = scmp.lt.s32.totalorder %s1735, 15
        %s1739 = scalar_select %p1738, %s1735, 15
        %s1740 = smul.addr %s1739, 2
        %s1741 = smul.addr %s1737, 32
        %s1742 = sadd.s32 %s1740, %s1741
        %s1743 = smul.addr %s1742, 8
        %s1744 = scalar_lea.vmem %s10, %s1743
      $region72: #{tpu_custom_call.1} parent=67 // pred_fallthru
        _
    $region68: #{tpu_custom_call.1} parent=5 // pred_fallthru
      _
  $region6: #{tpu_custom_call.1} parent=0 // loop_footer
    %s20 = sadd.s32 1, %s16
  $region7: #{tpu_custom_call.1} parent=0 // loop_footer_branch
    %15 = sbr.rel target = $region3
  $region8: #{tpu_custom_call.1} parent=0 // loop_exit
    _

</llo_original>
